<compile_context>
chip_gen: v6e
topology: v6e:2x2x1
jax: 0.10.0
libtpu: 0.0.40
codegen_flags: <defaults>
</compile_context>

<pallas_src>
import functools

import jax
import jax.numpy as jnp
from jax.experimental import pallas as pl
from jax.experimental.pallas import tpu as pltpu


def _linear_attention_kernel(
    x_ref,        # (bt, dim, N)      input pixels (channels on sublanes), bf16
    wqkv_ref,     # (3*hidden, dim)   to_qkv conv weight (no bias), bf16
    wout_ref,     # (dim, hidden)     to_out conv weight, bf16
    bout_ref,     # (dim, 1)          to_out conv bias, f32
    gamma_ref,    # (dim, 1)          GroupNorm weight, f32
    beta_ref,     # (dim, 1)          GroupNorm bias, f32
    o_ref,        # (bt, dim, N)      output, f32
    *,
    heads: int,
    dim_head: int,
    batch_block: int,
):
    hidden = heads * dim_head
    dim = o_ref.shape[1]
    N = o_ref.shape[2]
    scale = dim_head ** (-0.5)
    inv_n = 1.0 / float(dim * N)

    wqkv = wqkv_ref[...]                                   # bf16 (3*hidden, dim)
    wout = wout_ref[...]                                   # bf16 (dim, hidden)
    bout = bout_ref[...]                                   # f32  (dim, 1)
    gamma = gamma_ref[...]
    beta = beta_ref[...]

    # Block-diagonal head mask built in-kernel, once per grid step, from two
    # iotas + compares (no integer division, no HBM input, no resident tile).
    ri = jax.lax.broadcasted_iota(jnp.int32, (hidden, hidden), 0)
    ci = jax.lax.broadcasted_iota(jnp.int32, (hidden, hidden), 1)
    head_mask = jnp.zeros((hidden, hidden), jnp.float32)
    for h in range(heads):                                 # heads: tiny & static
        lo = h * dim_head
        hi = lo + dim_head
        blk = (ri >= lo) & (ri < hi) & (ci >= lo) & (ci < hi)
        head_mask = head_mask + blk.astype(jnp.float32)

    def body(i, carry):
        x = x_ref[i]                                       # (dim, N) bf16

        # to_qkv: 1x1 conv == W @ X; N stays on the lane axis.
        qkv = jnp.dot(wqkv, x, preferred_element_type=jnp.float32)   # (3h, N) f32
        q = qkv[0 * hidden:1 * hidden, :]
        k = qkv[1 * hidden:2 * hidden, :]
        v = qkv[2 * hidden:3 * hidden, :]

        # q: softmax over dim_head within each head (PyTorch softmax(dim=-2)).
        # Layout-preserving sublane split (dim_head % 8 == 0), no concat copy.
        q3 = q.reshape(heads, dim_head, N)
        qmax = jnp.max(q3, axis=1, keepdims=True)          # (heads, 1, N)
        qe = jnp.exp(q3 - qmax)
        qsum = jnp.sum(qe, axis=1, keepdims=True)
        q_soft = (qe * (pl.reciprocal(qsum, approx=True) * scale)
                  ).reshape(hidden, N)                     # (hidden, N) f32

        # k: softmax over N (lane axis), per channel row.
        kmax = jnp.max(k, axis=-1, keepdims=True)          # (hidden, 1)
        ke = jnp.exp(k - kmax)
        ksum = jnp.sum(ke, axis=-1, keepdims=True)
        k_soft = ke * pl.reciprocal(ksum, approx=True)     # (hidden, N) f32

        # ctx_T[e, d] = sum_n v[e, n] * k_soft[d, n] -- one full 128-wide MXU
        # matmul; both operands contract on their lane axis (relies on the
        # transposed-operand MXU path; check MLIR for a stray vxpose if this
        # ever shows up as XLU-bound).
        ctx_t = jax.lax.dot_general(
            v.astype(jnp.bfloat16), k_soft.astype(jnp.bfloat16),
            dimension_numbers=(((1,), (1,)), ((), ())),
            preferred_element_type=jnp.float32)            # (hidden, hidden)
        ctx_t = ctx_t * head_mask                          # zero cross-head blocks

        # out[e, n] = sum_d ctx_T[e, d] * q_soft[d, n]
        out_all = jnp.dot(ctx_t.astype(jnp.bfloat16), q_soft.astype(jnp.bfloat16),
                          preferred_element_type=jnp.float32)        # (hidden, N)

        # to_out 1x1 conv (with bias).
        y = jnp.dot(wout, out_all.astype(jnp.bfloat16),
                    preferred_element_type=jnp.float32) + bout       # (dim, N) f32

        # GroupNorm(1, dim): per-sample stats over the whole (C, H*W) slab.
        # Stage as per-row lane reductions + one tiny cross-row reduce, then a
        # single fused `y * a + b` pass (a = inv*gamma, b = beta - mean*a).
        row_s = jnp.sum(y, axis=-1, keepdims=True)         # (dim, 1)
        row_ss = jnp.sum(y * y, axis=-1, keepdims=True)    # (dim, 1)
        mean = jnp.sum(row_s) * inv_n
        # NOTE: single-pass E[y^2]-E[y]^2 in f32 can cancel if |mean| >> std;
        # acceptable at the 5e-2 tolerance used here (bf16 MXU + approx recip).
        var = jnp.sum(row_ss) * inv_n - mean * mean
        inv = jax.lax.rsqrt(var + 1e-5)
        a = inv * gamma                                    # (dim, 1)
        b = beta - mean * a                                # (dim, 1)
        o_ref[i] = (y * a + b).astype(o_ref.dtype)
        return carry

    if batch_block == 1:
        body(0, None)
    else:
        # Bounded loop keeps per-iteration vreg live ranges (a static Python
        # `for` does not); fully unroll only short trip counts for LLO
        # scheduling visibility.
        jax.lax.fori_loop(0, batch_block, body, None,
                          unroll=(batch_block <= 4))


def _pick_batch_block(B, dim, N, *, target_bytes=1 << 20, max_bt=8):
    """Samples per grid step.

    Big enough to amortize the ~0.35us per-step pipeline overhead, but:
      * capped at `max_bt` so the bounded batch-loop body stays small,
      * >= 4 grid steps when B >= 4 (v7x: 2 TensorCores x pipeline depth 2),
      * >= 2 grid steps when B >= 2.
    """
    per_sample = dim * N * (2 + 4)            # bf16 input + f32 output slab
    bt = max(1, target_bytes // per_sample)
    bt = min(bt, max_bt)
    if B >= 4:
        bt = min(bt, B // 4)
    elif B >= 2:
        bt = min(bt, B // 2)
    bt = int(max(1, min(bt, B)))
    while B % bt:
        bt -= 1
    return bt


def _estimate_vmem_bytes(bt, dim, hidden, N):
    io = 2 * bt * dim * N * (2 + 4)           # double-buffered bf16 in + f32 out
    weights = 2 * ((3 * hidden * dim + dim * hidden) * 2 + 3 * dim * 4)
    temps = (3 * hidden * N            # qkv
             + 3 * hidden * N          # q/k softmax temporaries + out_all
             + 2 * hidden * hidden     # ctx + mask
             + 2 * dim * N) * 4        # y + store temp
    return io + weights + temps


def linear_attention_pallas(x_nchw, params, *, heads, dim_head):
    """x_nchw: (B, dim, H, W) float32, matching the PyTorch forward."""
    B, dim, H, W = x_nchw.shape
    N = H * W
    hidden = heads * dim_head

    # Native layout: (B, dim, N) -- a contiguous reshape, no HBM transpose.
    # Fed as bf16: the kernel only ever uses bf16 x for the MXU, so this is
    # numerically identical but halves input HBM traffic / input VMEM.
    x = x_nchw.reshape(B, dim, N).astype(jnp.bfloat16)

    wqkv = params["wqkv"].astype(jnp.bfloat16)             # (3*hidden, dim)
    wout = params["wout"].astype(jnp.bfloat16)             # (dim, hidden)
    bout = params["bout"].reshape(dim, 1).astype(jnp.float32)
    gamma = params["gn_weight"].reshape(dim, 1).astype(jnp.float32)
    beta = params["gn_bias"].reshape(dim, 1).astype(jnp.float32)

    bt = _pick_batch_block(B, dim, N)

    # Whole-N blocking: k-softmax (over N) and GroupNorm are per-sample global
    # reductions, so the full (dim, N) slab must fit VMEM.  Budget against the
    # actual device VMEM (generation-aware: 128 MiB v5e/v6e, 64 MiB/TC v7x).
    vmem_est = _estimate_vmem_bytes(bt, dim, hidden, N)
    try:
        vmem_cap = int(pltpu.get_tpu_info().vmem_capacity_bytes)
    except Exception:
        vmem_cap = 64 * 1024 * 1024                        # conservative (v7x)
    budget = vmem_cap // 2
    assert vmem_est < budget, (
        f"per-step VMEM estimate {vmem_est} B exceeds budget {budget} B; tile "
        "N with a two-pass k-softmax / GroupNorm for this shape")
    # Tight, estimate-derived limit: leaves compiler-scratch headroom on v7x
    # while still allowing larger tiles on the 128-MiB parts.
    vmem_limit = int(min(max(2 * vmem_est, 16 * 1024 * 1024), budget))

    kernel = functools.partial(_linear_attention_kernel,
                               heads=heads, dim_head=dim_head, batch_block=bt)

    out = pl.pallas_call(
        kernel,
        out_shape=jax.ShapeDtypeStruct((B, dim, N), jnp.float32),
        grid_spec=pltpu.PrefetchScalarGridSpec(
            num_scalar_prefetch=0,
            grid=(B // bt,),
            in_specs=[
                pl.BlockSpec((bt, dim, N), lambda b: (b, 0, 0)),
                pl.BlockSpec((3 * hidden, dim), lambda b: (0, 0)),
                pl.BlockSpec((dim, hidden), lambda b: (0, 0)),
                pl.BlockSpec((dim, 1), lambda b: (0, 0)),
                pl.BlockSpec((dim, 1), lambda b: (0, 0)),
                pl.BlockSpec((dim, 1), lambda b: (0, 0)),
            ],
            out_specs=pl.BlockSpec((bt, dim, N), lambda b: (b, 0, 0)),
        ),
        compiler_params=pltpu.CompilerParams(
            dimension_semantics=("parallel",),
            vmem_limit_bytes=vmem_limit),
    )(x, wqkv, wout, bout, gamma, beta)

    # (B, dim, N) -> NCHW is again just a free reshape.
    return out.reshape(B, dim, H, W)


def linear_attention_ref(x_nchw, params, *, heads, dim_head):
    """Pure-JAX f32 reference mirroring the PyTorch forward (for validation)."""
    B, dim, H, W = x_nchw.shape
    N = H * W
    hidden = heads * dim_head
    scale = dim_head ** (-0.5)

    x = x_nchw.reshape(B, dim, N)                                   # (B, C, N)
    qkv = jnp.einsum("oc,bcn->bon", params["wqkv"], x)              # (B, 3h, N)
    q, k, v = jnp.split(qkv, 3, axis=1)

    def rearr(t):
        return t.reshape(B, heads, dim_head, N)

    q, k, v = map(rearr, (q, k, v))
    q = jax.nn.softmax(q, axis=-2) * scale
    k = jax.nn.softmax(k, axis=-1)
    context = jnp.einsum("bhdn,bhen->bhde", k, v)
    out = jnp.einsum("bhde,bhdn->bhen", context, q)
    out = out.reshape(B, hidden, N)
    y = jnp.einsum("oc,bcn->bon", params["wout"], out) + params["bout"][None, :, None]
    mean = jnp.mean(y, axis=(1, 2), keepdims=True)
    var = jnp.mean((y - mean) ** 2, axis=(1, 2), keepdims=True)
    y = (y - mean) * jax.lax.rsqrt(var + 1e-5)
    y = y * params["gn_weight"][None, :, None] + params["gn_bias"][None, :, None]
    return y.reshape(B, dim, H, W)


if __name__ == "__main__":
    # Shapes consistent with the module: dim=32, heads=4, dim_head=32.
    # H = W = 16 -> N = 256 (multiple of 128: lane-dense).
    heads, dim_head = 4, 32
    hidden = heads * dim_head
    dim, H, W = 32, 16, 16

    key = jax.random.PRNGKey(0)
    kx, k1, k2, k3, k4, k5 = jax.random.split(key, 6)

    # Deterministic synthetic parameters (shapes match the nn.Module).
    params = {
        "wqkv": 0.1 * jax.random.normal(k1, (3 * hidden, dim), dtype=jnp.float32),
        "wout": 0.1 * jax.random.normal(k2, (dim, hidden), dtype=jnp.float32),
        "bout": 0.1 * jax.random.normal(k3, (dim,), dtype=jnp.float32),
        "gn_weight": 1.0 + 0.1 * jax.random.normal(k4, (dim,), dtype=jnp.float32),
        "gn_bias": 0.1 * jax.random.normal(k5, (dim,), dtype=jnp.float32),
    }

    # B=2 exercises bt=1 (no batch loop); B=8 exercises the bounded fori path.
    for B in (2, 8):
        x = jax.random.normal(kx, (B, dim, H, W), dtype=jnp.float32)
        out = linear_attention_pallas(x, params, heads=heads, dim_head=dim_head)
        out = jax.block_until_ready(out)
        ref = linear_attention_ref(x, params, heads=heads, dim_head=dim_head)
        assert out.shape == (B, dim, H, W)
        # bf16 MXU inputs (f32 accumulation) + EUP approx reciprocals => looser
        # tolerance than the pure-f32 path (intentional).
        max_err = float(jnp.max(jnp.abs(out - ref)))
        assert jnp.allclose(out, ref, atol=5e-2, rtol=5e-2), (B, max_err)

    print("KERNEL_OK")
</pallas_src>

<mosaic_0001>
module attributes {stable_mosaic.version = 11 : i64} {
  func.func @_linear_attention_kernel(%arg0: i32, %arg1: memref<1x32x256xbf16, #tpu.memory_space<vmem>>, %arg2: memref<384x32xbf16, #tpu.memory_space<vmem>>, %arg3: memref<32x128xbf16, #tpu.memory_space<vmem>>, %arg4: memref<32x1xf32, #tpu.memory_space<vmem>>, %arg5: memref<32x1xf32, #tpu.memory_space<vmem>>, %arg6: memref<32x1xf32, #tpu.memory_space<vmem>>, %arg7: memref<1x32x256xf32, #tpu.memory_space<vmem>>) attributes {dimension_semantics = [#tpu.dimension_semantics<parallel>], iteration_bounds = array<i64: 2>, scalar_prefetch = 0 : i64, scratch_operands = 0 : i64, tpu.core_type = #tpu.core_type<tc>, window_params = [{transform_indices = @transform_0, window_bounds = array<i64: 1, 32, 256>}, {pipeline_mode = #tpu.pipeline_mode<synchronous>, transform_indices = @transform_1, window_bounds = array<i64: 384, 32>}, {pipeline_mode = #tpu.pipeline_mode<synchronous>, transform_indices = @transform_2, window_bounds = array<i64: 32, 128>}, {pipeline_mode = #tpu.pipeline_mode<synchronous>, transform_indices = @transform_3, window_bounds = array<i64: 32, 1>}, {pipeline_mode = #tpu.pipeline_mode<synchronous>, transform_indices = @transform_4, window_bounds = array<i64: 32, 1>}, {pipeline_mode = #tpu.pipeline_mode<synchronous>, transform_indices = @transform_5, window_bounds = array<i64: 32, 1>}, {transform_indices = @transform_6, window_bounds = array<i64: 1, 32, 256>}]} {
    %c0 = arith.constant 0 : index
    %c0_0 = arith.constant 0 : index
    %0 = vector.load %arg2[%c0, %c0_0] : memref<384x32xbf16, #tpu.memory_space<vmem>>, vector<384x32xbf16>
    %c0_1 = arith.constant 0 : index
    %c0_2 = arith.constant 0 : index
    %1 = vector.load %arg3[%c0_1, %c0_2] : memref<32x128xbf16, #tpu.memory_space<vmem>>, vector<32x128xbf16>
    %c0_3 = arith.constant 0 : index
    %c0_4 = arith.constant 0 : index
    %2 = vector.load %arg4[%c0_3, %c0_4] : memref<32x1xf32, #tpu.memory_space<vmem>>, vector<32x1xf32>
    %c0_5 = arith.constant 0 : index
    %c0_6 = arith.constant 0 : index
    %3 = vector.load %arg5[%c0_5, %c0_6] : memref<32x1xf32, #tpu.memory_space<vmem>>, vector<32x1xf32>
    %c0_7 = arith.constant 0 : index
    %c0_8 = arith.constant 0 : index
    %4 = vector.load %arg6[%c0_7, %c0_8] : memref<32x1xf32, #tpu.memory_space<vmem>>, vector<32x1xf32>
    %5 = tpu.iota {dimensions = array<i32: 0>} : vector<128x128xi32>
    %6 = tpu.iota {dimensions = array<i32: 1>} : vector<128x128xi32>
    %cst = arith.constant 0.000000e+00 : f32
    %7 = vector.broadcast %cst : f32 to vector<128x128xf32>
    %c0_i32 = arith.constant 0 : i32
    %8 = vector.broadcast %c0_i32 : i32 to vector<128x128xi32>
    %9 = arith.cmpi sge, %5, %8 : vector<128x128xi32>
    %c32_i32 = arith.constant 32 : i32
    %10 = vector.broadcast %c32_i32 : i32 to vector<128x128xi32>
    %11 = arith.cmpi slt, %5, %10 : vector<128x128xi32>
    %12 = arith.andi %9, %11 : vector<128x128xi1>
    %c0_i32_9 = arith.constant 0 : i32
    %13 = vector.broadcast %c0_i32_9 : i32 to vector<128x128xi32>
    %14 = arith.cmpi sge, %6, %13 : vector<128x128xi32>
    %15 = arith.andi %12, %14 : vector<128x128xi1>
    %c32_i32_10 = arith.constant 32 : i32
    %16 = vector.broadcast %c32_i32_10 : i32 to vector<128x128xi32>
    %17 = arith.cmpi slt, %6, %16 : vector<128x128xi32>
    %18 = arith.andi %15, %17 : vector<128x128xi1>
    %19 = arith.extui %18 : vector<128x128xi1> to vector<128x128xi32>
    %20 = arith.sitofp %19 : vector<128x128xi32> to vector<128x128xf32>
    %21 = arith.addf %7, %20 : vector<128x128xf32>
    %c32_i32_11 = arith.constant 32 : i32
    %22 = vector.broadcast %c32_i32_11 : i32 to vector<128x128xi32>
    %23 = arith.cmpi sge, %5, %22 : vector<128x128xi32>
    %c64_i32 = arith.constant 64 : i32
    %24 = vector.broadcast %c64_i32 : i32 to vector<128x128xi32>
    %25 = arith.cmpi slt, %5, %24 : vector<128x128xi32>
    %26 = arith.andi %23, %25 : vector<128x128xi1>
    %c32_i32_12 = arith.constant 32 : i32
    %27 = vector.broadcast %c32_i32_12 : i32 to vector<128x128xi32>
    %28 = arith.cmpi sge, %6, %27 : vector<128x128xi32>
    %29 = arith.andi %26, %28 : vector<128x128xi1>
    %c64_i32_13 = arith.constant 64 : i32
    %30 = vector.broadcast %c64_i32_13 : i32 to vector<128x128xi32>
    %31 = arith.cmpi slt, %6, %30 : vector<128x128xi32>
    %32 = arith.andi %29, %31 : vector<128x128xi1>
    %33 = arith.extui %32 : vector<128x128xi1> to vector<128x128xi32>
    %34 = arith.sitofp %33 : vector<128x128xi32> to vector<128x128xf32>
    %35 = arith.addf %21, %34 : vector<128x128xf32>
    %c64_i32_14 = arith.constant 64 : i32
    %36 = vector.broadcast %c64_i32_14 : i32 to vector<128x128xi32>
    %37 = arith.cmpi sge, %5, %36 : vector<128x128xi32>
    %c96_i32 = arith.constant 96 : i32
    %38 = vector.broadcast %c96_i32 : i32 to vector<128x128xi32>
    %39 = arith.cmpi slt, %5, %38 : vector<128x128xi32>
    %40 = arith.andi %37, %39 : vector<128x128xi1>
    %c64_i32_15 = arith.constant 64 : i32
    %41 = vector.broadcast %c64_i32_15 : i32 to vector<128x128xi32>
    %42 = arith.cmpi sge, %6, %41 : vector<128x128xi32>
    %43 = arith.andi %40, %42 : vector<128x128xi1>
    %c96_i32_16 = arith.constant 96 : i32
    %44 = vector.broadcast %c96_i32_16 : i32 to vector<128x128xi32>
    %45 = arith.cmpi slt, %6, %44 : vector<128x128xi32>
    %46 = arith.andi %43, %45 : vector<128x128xi1>
    %47 = arith.extui %46 : vector<128x128xi1> to vector<128x128xi32>
    %48 = arith.sitofp %47 : vector<128x128xi32> to vector<128x128xf32>
    %49 = arith.addf %35, %48 : vector<128x128xf32>
    %c96_i32_17 = arith.constant 96 : i32
    %50 = vector.broadcast %c96_i32_17 : i32 to vector<128x128xi32>
    %51 = arith.cmpi sge, %5, %50 : vector<128x128xi32>
    %c128_i32 = arith.constant 128 : i32
    %52 = vector.broadcast %c128_i32 : i32 to vector<128x128xi32>
    %53 = arith.cmpi slt, %5, %52 : vector<128x128xi32>
    %54 = arith.andi %51, %53 : vector<128x128xi1>
    %c96_i32_18 = arith.constant 96 : i32
    %55 = vector.broadcast %c96_i32_18 : i32 to vector<128x128xi32>
    %56 = arith.cmpi sge, %6, %55 : vector<128x128xi32>
    %57 = arith.andi %54, %56 : vector<128x128xi1>
    %c128_i32_19 = arith.constant 128 : i32
    %58 = vector.broadcast %c128_i32_19 : i32 to vector<128x128xi32>
    %59 = arith.cmpi slt, %6, %58 : vector<128x128xi32>
    %60 = arith.andi %57, %59 : vector<128x128xi1>
    %61 = arith.extui %60 : vector<128x128xi1> to vector<128x128xi32>
    %62 = arith.sitofp %61 : vector<128x128xi32> to vector<128x128xf32>
    %63 = arith.addf %49, %62 : vector<128x128xf32>
    %c0_20 = arith.constant 0 : index
    %c0_21 = arith.constant 0 : index
    %c0_22 = arith.constant 0 : index
    %64 = vector.load %arg1[%c0_20, %c0_21, %c0_22] : memref<1x32x256xbf16, #tpu.memory_space<vmem>>, vector<1x32x256xbf16>
    %65 = vector.shape_cast %64 : vector<1x32x256xbf16> to vector<32x256xbf16>
    %cst_23 = arith.constant dense<0.000000e+00> : vector<384x256xf32>
    %66 = tpu.matmul %0, %65, %cst_23 {dimension_numbers = #tpu.dot_dimension_numbers<[1], [0], [0], [1], [0, 0, 1, 1], [], []>} : vector<384x32xbf16>, vector<32x256xbf16>, vector<384x256xf32> -> vector<384x256xf32>
    %67 = vector.extract_strided_slice %66 {offsets = [0, 0], sizes = [128, 256], strides = [1, 1]} : vector<384x256xf32> to vector<128x256xf32>
    %68 = vector.extract_strided_slice %66 {offsets = [128, 0], sizes = [128, 256], strides = [1, 1]} : vector<384x256xf32> to vector<128x256xf32>
    %69 = vector.extract_strided_slice %66 {offsets = [256, 0], sizes = [128, 256], strides = [1, 1]} : vector<384x256xf32> to vector<128x256xf32>
    %70 = vector.shape_cast %67 : vector<128x256xf32> to vector<4x32x256xf32>
    %cst_24 = arith.constant dense<0xFF800000> : vector<4x256xf32>
    %71 = vector.multi_reduction <maximumf>, %70, %cst_24 [1] : vector<4x32x256xf32> to vector<4x256xf32>
    %72 = vector.shape_cast %71 : vector<4x256xf32> to vector<4x1x256xf32>
    %73 = vector.broadcast %72 : vector<4x1x256xf32> to vector<4x32x256xf32>
    %74 = arith.subf %70, %73 : vector<4x32x256xf32>
    %75 = math.exp %74 : vector<4x32x256xf32>
    %cst_25 = arith.constant dense<0.000000e+00> : vector<4x256xf32>
    %76 = vector.multi_reduction <add>, %75, %cst_25 [1] : vector<4x32x256xf32> to vector<4x256xf32>
    %77 = vector.shape_cast %76 : vector<4x256xf32> to vector<4x1x256xf32>
    %78 = tpu.reciprocal %77 {approx = true} : vector<4x1x256xf32> -> vector<4x1x256xf32>
    %cst_26 = arith.constant 0.176776692 : f32
    %79 = vector.broadcast %cst_26 : f32 to vector<4x1x256xf32>
    %80 = arith.mulf %78, %79 : vector<4x1x256xf32>
    %81 = vector.broadcast %80 : vector<4x1x256xf32> to vector<4x32x256xf32>
    %82 = arith.mulf %75, %81 : vector<4x32x256xf32>
    %83 = vector.shape_cast %82 : vector<4x32x256xf32> to vector<128x256xf32>
    %cst_27 = arith.constant dense<0xFF800000> : vector<128xf32>
    %84 = vector.multi_reduction <maximumf>, %68, %cst_27 [1] : vector<128x256xf32> to vector<128xf32>
    %85 = vector.shape_cast %84 : vector<128xf32> to vector<128x1xf32>
    %86 = vector.broadcast %85 : vector<128x1xf32> to vector<128x256xf32>
    %87 = arith.subf %68, %86 : vector<128x256xf32>
    %88 = math.exp %87 : vector<128x256xf32>
    %cst_28 = arith.constant dense<0.000000e+00> : vector<128xf32>
    %89 = vector.multi_reduction <add>, %88, %cst_28 [1] : vector<128x256xf32> to vector<128xf32>
    %90 = vector.shape_cast %89 : vector<128xf32> to vector<128x1xf32>
    %91 = tpu.reciprocal %90 {approx = true} : vector<128x1xf32> -> vector<128x1xf32>
    %92 = vector.broadcast %91 : vector<128x1xf32> to vector<128x256xf32>
    %93 = arith.mulf %88, %92 : vector<128x256xf32>
    %94 = arith.truncf %69 : vector<128x256xf32> to vector<128x256xbf16>
    %95 = arith.truncf %93 : vector<128x256xf32> to vector<128x256xbf16>
    %cst_29 = arith.constant dense<0.000000e+00> : vector<128x128xf32>
    %96 = tpu.matmul %94, %95, %cst_29 {dimension_numbers = #tpu.dot_dimension_numbers<[1], [1], [0], [0], [0, 0, 1, 0], [], []>} : vector<128x256xbf16>, vector<128x256xbf16>, vector<128x128xf32> -> vector<128x128xf32>
    %97 = arith.mulf %96, %63 : vector<128x128xf32>
    %98 = arith.truncf %97 : vector<128x128xf32> to vector<128x128xbf16>
    %99 = arith.truncf %83 : vector<128x256xf32> to vector<128x256xbf16>
    %cst_30 = arith.constant dense<0.000000e+00> : vector<128x256xf32>
    %100 = tpu.matmul %98, %99, %cst_30 {dimension_numbers = #tpu.dot_dimension_numbers<[1], [0], [0], [1], [0, 0, 1, 1], [], []>} : vector<128x128xbf16>, vector<128x256xbf16>, vector<128x256xf32> -> vector<128x256xf32>
    %101 = arith.truncf %100 : vector<128x256xf32> to vector<128x256xbf16>
    %cst_31 = arith.constant dense<0.000000e+00> : vector<32x256xf32>
    %102 = tpu.matmul %1, %101, %cst_31 {dimension_numbers = #tpu.dot_dimension_numbers<[1], [0], [0], [1], [0, 0, 1, 1], [], []>} : vector<32x128xbf16>, vector<128x256xbf16>, vector<32x256xf32> -> vector<32x256xf32>
    %103 = vector.broadcast %2 : vector<32x1xf32> to vector<32x256xf32>
    %104 = arith.addf %102, %103 : vector<32x256xf32>
    %cst_32 = arith.constant dense<0.000000e+00> : vector<32xf32>
    %105 = vector.multi_reduction <add>, %104, %cst_32 [1] : vector<32x256xf32> to vector<32xf32>
    %106 = vector.shape_cast %105 : vector<32xf32> to vector<32x1xf32>
    %107 = arith.mulf %104, %104 : vector<32x256xf32>
    %cst_33 = arith.constant dense<0.000000e+00> : vector<32xf32>
    %108 = vector.multi_reduction <add>, %107, %cst_33 [1] : vector<32x256xf32> to vector<32xf32>
    %109 = vector.shape_cast %108 : vector<32xf32> to vector<32x1xf32>
    %110 = vector.shape_cast %106 : vector<32x1xf32> to vector<1x32x1xf32>
    %cst_34 = arith.constant dense<0.000000e+00> : vector<1xf32>
    %111 = vector.multi_reduction <add>, %110, %cst_34 [1, 2] : vector<1x32x1xf32> to vector<1xf32>
    %112 = vector.shape_cast %111 : vector<1xf32> to vector<1x1x1xf32>
    %113 = vector.extract %112[0, 0, 0] : f32 from vector<1x1x1xf32>
    %cst_35 = arith.constant 1.22070313E-4 : f32
    %114 = arith.mulf %113, %cst_35 : f32
    %115 = vector.shape_cast %109 : vector<32x1xf32> to vector<1x32x1xf32>
    %cst_36 = arith.constant dense<0.000000e+00> : vector<1xf32>
    %116 = vector.multi_reduction <add>, %115, %cst_36 [1, 2] : vector<1x32x1xf32> to vector<1xf32>
    %117 = vector.shape_cast %116 : vector<1xf32> to vector<1x1x1xf32>
    %118 = vector.extract %117[0, 0, 0] : f32 from vector<1x1x1xf32>
    %cst_37 = arith.constant 1.22070313E-4 : f32
    %119 = arith.mulf %118, %cst_37 : f32
    %120 = arith.mulf %114, %114 : f32
    %121 = arith.subf %119, %120 : f32
    %cst_38 = arith.constant 9.99999974E-6 : f32
    %122 = arith.addf %121, %cst_38 : f32
    %123 = math.rsqrt %122 : f32
    %124 = vector.broadcast %123 : f32 to vector<32x1xf32>
    %125 = arith.mulf %124, %3 : vector<32x1xf32>
    %126 = vector.broadcast %114 : f32 to vector<32x1xf32>
    %127 = arith.mulf %126, %125 : vector<32x1xf32>
    %128 = arith.subf %4, %127 : vector<32x1xf32>
    %129 = vector.broadcast %125 : vector<32x1xf32> to vector<32x256xf32>
    %130 = arith.mulf %104, %129 : vector<32x256xf32>
    %131 = vector.broadcast %128 : vector<32x1xf32> to vector<32x256xf32>
    %132 = arith.addf %130, %131 : vector<32x256xf32>
    %c0_39 = arith.constant 0 : index
    %c0_40 = arith.constant 0 : index
    %c0_41 = arith.constant 0 : index
    %133 = vector.load %arg7[%c0_39, %c0_40, %c0_41] : memref<1x32x256xf32, #tpu.memory_space<vmem>>, vector<1x32x256xf32>
    %134 = vector.shape_cast %133 : vector<1x32x256xf32> to vector<32x256xf32>
    %135 = vector.shape_cast %132 : vector<32x256xf32> to vector<1x32x256xf32>
    tpu.vector_store %arg7[%c0_39, %c0_40, %c0_41], %135 {strides = array<i32>} : memref<1x32x256xf32, #tpu.memory_space<vmem>>, vector<1x32x256xf32>,
    return
  }
  func.func @transform_0(%arg0: i32) -> (i32, i32, i32) {
    %c0_i32 = arith.constant 0 : i32
    %c0_i32_0 = arith.constant 0 : i32
    %c0_i32_1 = arith.constant 0 : i32
    return %arg0, %c0_i32, %c0_i32_0 : i32, i32, i32
  }
  func.func @transform_1(%arg0: i32) -> (i32, i32) {
    %c0_i32 = arith.constant 0 : i32
    %c0_i32_0 = arith.constant 0 : i32
    %c0_i32_1 = arith.constant 0 : i32
    return %c0_i32, %c0_i32_0 : i32, i32
  }
  func.func @transform_2(%arg0: i32) -> (i32, i32) {
    %c0_i32 = arith.constant 0 : i32
    %c0_i32_0 = arith.constant 0 : i32
    %c0_i32_1 = arith.constant 0 : i32
    return %c0_i32, %c0_i32_0 : i32, i32
  }
  func.func @transform_3(%arg0: i32) -> (i32, i32) {
    %c0_i32 = arith.constant 0 : i32
    %c0_i32_0 = arith.constant 0 : i32
    %c0_i32_1 = arith.constant 0 : i32
    return %c0_i32, %c0_i32_0 : i32, i32
  }
  func.func @transform_4(%arg0: i32) -> (i32, i32) {
    %c0_i32 = arith.constant 0 : i32
    %c0_i32_0 = arith.constant 0 : i32
    %c0_i32_1 = arith.constant 0 : i32
    return %c0_i32, %c0_i32_0 : i32, i32
  }
  func.func @transform_5(%arg0: i32) -> (i32, i32) {
    %c0_i32 = arith.constant 0 : i32
    %c0_i32_0 = arith.constant 0 : i32
    %c0_i32_1 = arith.constant 0 : i32
    return %c0_i32, %c0_i32_0 : i32, i32
  }
  func.func @transform_6(%arg0: i32) -> (i32, i32, i32) {
    %c0_i32 = arith.constant 0 : i32
    %c0_i32_0 = arith.constant 0 : i32
    %c0_i32_1 = arith.constant 0 : i32
    return %arg0, %c0_i32, %c0_i32_0 : i32, i32, i32
  }
}

</mosaic_0001>

<llo_original>
// kernel: tpu_custom_call.1
$region0: #{tpu_custom_call.1}
  #allocation0 [shape = 'u32[]', space=smem, size = 0x4, offset = 0x4, fixed_abs, tag = 'smem constant byte address 0x4 - core index']
  #allocation1 [shape = 'u32[144,128]{1,0:T(1,128)}', space=vmem, size = 0x12000, scoped, tag = 'internal scratch']
  %s0 = inlined_call_operand.vmem [shape: bf16[2,32,256], index: 0, kind: input, shape index: {}]
  %s1 = inlined_call_operand.vmem [shape: bf16[384,32], index: 1, kind: input, shape index: {}]
  %s2 = inlined_call_operand.vmem [shape: bf16[32,128], index: 2, kind: input, shape index: {}]
  %s3 = inlined_call_operand.vmem [shape: f32[32,1], index: 3, kind: input, shape index: {}]
  %s4 = inlined_call_operand.vmem [shape: f32[32,1], index: 4, kind: input, shape index: {}]
  %s5 = inlined_call_operand.vmem [shape: f32[32,1], index: 5, kind: input, shape index: {}]
  %s6 = inlined_call_operand.hbm [shape: f32[2,32,256], index: 6, kind: output, shape index: {}]
  %s7 = sld [smem:[#allocation0]]
  $region57: #{tpu_custom_call.1} parent=0
    _
  %s9 = ssub.s32 1, %s7
  %s10 = scalar_select 0, %s9, %s7
  $region1: #{tpu_custom_call.1} parent=0
    #allocation2 [shape = 'u8[65536]{0}', space=vmem, size = 0x10000, scoped, tag = 'output window, operand 0']
    #allocation3 [shape = 's32[2]{0}', space=sflag, size = 0x8, scoped, tag = 'scoped memory for tpu_custom_call.1']
    %11 = vsyncpa [#allocation3], 0
    %s12 = scalar_lea.sflag [#allocation3], 1
    %13 = vsyncpa %s12, 0
    loop: start=0, step=1, limit=4
    $region2: #{tpu_custom_call.1} parent=1 // loop_pre_header
      _
    $region3: #{tpu_custom_call.1} parent=1 // loop_header
      %s15 = sphi 0, %s19
      %p16 = scmp.ge.s32.totalorder %s15, 4
      %s25 = sphi 0, %s27
      %s28 = sphi 0, %s25
      %s29 = sphi 0, %s28
      %s45 = sphi 0, %s29
      %s49 = sphi 0, %s49
      %s51 = sphi 0, %s49
      %s52 = sphi 0, %s51
      %s66 = sphi 0, %s52
      %s70 = sphi 0, %s70
      %s72 = sphi 0, %s70
      %s73 = sphi 0, %s72
      %s87 = sphi 0, %s73
      %s91 = sphi 0, %s91
      %s93 = sphi 0, %s91
      %s94 = sphi 0, %s93
      %s108 = sphi 0, %s94
      %s112 = sphi 0, %s112
      %s114 = sphi 0, %s112
      %s115 = sphi 0, %s114
      %s129 = sphi 0, %s115
      %s133 = sphi 0, %s133
      %s135 = sphi 0, %s133
      %s136 = sphi 0, %s135
      %s150 = sphi 0, %s136
      %s156 = sphi 0, %s158
      %s159 = sphi 0, %s156
      %s160 = sphi 0, %s159
      %s176 = sphi 0, %s160
    $region4: #{tpu_custom_call.1} parent=1 // loop_header_branch
      %18 = sbr.rel (%p16) target = $region8
    $region5: #{tpu_custom_call.1} parent=1 // loop_body
      %s20 = ssub.s32 %s15, 1
      %s21 = ssub.s32 %s15, 2
      %s22 = sadd.s32 %s15, 1
      %s23 = ssub.s32 %s15, %s22
      %p24 = scmp.eq.s32.totalorder %s23, 0
      %s26 = sadd.s32 %s25, 1
      %s27 = scalar_select %p24, %s25, %s26
      %p30 = pneg %p24
      %p31 = scmp.eq.s32.totalorder %s15, 1
      %p32 = por %p30, %p31
      %p33 = scmp.ne.s32.totalorder %s25, %s28
      %p34 = scmp.eq.s32.totalorder %s15, 0
      %p35 = por %p33, %p34
      %p36 = scmp.ne.s32.totalorder %s25, %s28
      %p37 = scmp.eq.s32.totalorder %s20, 1
      %p38 = por %p36, %p37
      %p39 = scmp.ne.s32.totalorder %s28, %s29
      %p40 = scmp.eq.s32.totalorder %s20, 0
      %p41 = por %p39, %p40
      %p42 = scmp.ne.s32.totalorder %s28, %s29
      %p43 = scmp.eq.s32.totalorder %s21, 1
      %p44 = por %p42, %p43
      %p46 = scmp.ne.s32.totalorder %s29, %s45
      %p47 = scmp.eq.s32.totalorder %s21, 0
      %p48 = por %p46, %p47
      %s50 = sadd.s32 %s49, 1
      %p53 = scmp.eq.s32.totalorder %s15, 1
      %p54 = scmp.ne.s32.totalorder %s49, %s51
      %p55 = scmp.eq.s32.totalorder %s15, 0
      %p56 = por %p54, %p55
      %p57 = scmp.ne.s32.totalorder %s49, %s51
      %p58 = scmp.eq.s32.totalorder %s20, 1
      %p59 = por %p57, %p58
      %p60 = scmp.ne.s32.totalorder %s51, %s52
      %p61 = scmp.eq.s32.totalorder %s20, 0
      %p62 = por %p60, %p61
      %p63 = scmp.ne.s32.totalorder %s51, %s52
      %p64 = scmp.eq.s32.totalorder %s21, 1
      %p65 = por %p63, %p64
      %p67 = scmp.ne.s32.totalorder %s52, %s66
      %p68 = scmp.eq.s32.totalorder %s21, 0
      %p69 = por %p67, %p68
      %s71 = sadd.s32 %s70, 1
      %p74 = scmp.eq.s32.totalorder %s15, 1
      %p75 = scmp.ne.s32.totalorder %s70, %s72
      %p76 = scmp.eq.s32.totalorder %s15, 0
      %p77 = por %p75, %p76
      %p78 = scmp.ne.s32.totalorder %s70, %s72
      %p79 = scmp.eq.s32.totalorder %s20, 1
      %p80 = por %p78, %p79
      %p81 = scmp.ne.s32.totalorder %s72, %s73
      %p82 = scmp.eq.s32.totalorder %s20, 0
      %p83 = por %p81, %p82
      %p84 = scmp.ne.s32.totalorder %s72, %s73
      %p85 = scmp.eq.s32.totalorder %s21, 1
      %p86 = por %p84, %p85
      %p88 = scmp.ne.s32.totalorder %s73, %s87
      %p89 = scmp.eq.s32.totalorder %s21, 0
      %p90 = por %p88, %p89
      %s92 = sadd.s32 %s91, 1
      %p95 = scmp.eq.s32.totalorder %s15, 1
      %p96 = scmp.ne.s32.totalorder %s91, %s93
      %p97 = scmp.eq.s32.totalorder %s15, 0
      %p98 = por %p96, %p97
      %p99 = scmp.ne.s32.totalorder %s91, %s93
      %p100 = scmp.eq.s32.totalorder %s20, 1
      %p101 = por %p99, %p100
      %p102 = scmp.ne.s32.totalorder %s93, %s94
      %p103 = scmp.eq.s32.totalorder %s20, 0
      %p104 = por %p102, %p103
      %p105 = scmp.ne.s32.totalorder %s93, %s94
      %p106 = scmp.eq.s32.totalorder %s21, 1
      %p107 = por %p105, %p106
      %p109 = scmp.ne.s32.totalorder %s94, %s108
      %p110 = scmp.eq.s32.totalorder %s21, 0
      %p111 = por %p109, %p110
      %s113 = sadd.s32 %s112, 1
      %p116 = scmp.eq.s32.totalorder %s15, 1
      %p117 = scmp.ne.s32.totalorder %s112, %s114
      %p118 = scmp.eq.s32.totalorder %s15, 0
      %p119 = por %p117, %p118
      %p120 = scmp.ne.s32.totalorder %s112, %s114
      %p121 = scmp.eq.s32.totalorder %s20, 1
      %p122 = por %p120, %p121
      %p123 = scmp.ne.s32.totalorder %s114, %s115
      %p124 = scmp.eq.s32.totalorder %s20, 0
      %p125 = por %p123, %p124
      %p126 = scmp.ne.s32.totalorder %s114, %s115
      %p127 = scmp.eq.s32.totalorder %s21, 1
      %p128 = por %p126, %p127
      %p130 = scmp.ne.s32.totalorder %s115, %s129
      %p131 = scmp.eq.s32.totalorder %s21, 0
      %p132 = por %p130, %p131
      %s134 = sadd.s32 %s133, 1
      %p137 = scmp.eq.s32.totalorder %s15, 1
      %p138 = scmp.ne.s32.totalorder %s133, %s135
      %p139 = scmp.eq.s32.totalorder %s15, 0
      %p140 = por %p138, %p139
      %p141 = scmp.ne.s32.totalorder %s133, %s135
      %p142 = scmp.eq.s32.totalorder %s20, 1
      %p143 = por %p141, %p142
      %p144 = scmp.ne.s32.totalorder %s135, %s136
      %p145 = scmp.eq.s32.totalorder %s20, 0
      %p146 = por %p144, %p145
      %p147 = scmp.ne.s32.totalorder %s135, %s136
      %p148 = scmp.eq.s32.totalorder %s21, 1
      %p149 = por %p147, %p148
      %p151 = scmp.ne.s32.totalorder %s136, %s150
      %p152 = scmp.eq.s32.totalorder %s21, 0
      %p153 = por %p151, %p152
      %s154 = ssub.s32 %s15, %s22
      %p155 = scmp.eq.s32.totalorder %s154, 0
      %s157 = sadd.s32 %s156, 1
      %s158 = scalar_select %p155, %s156, %s157
      %p161 = pneg %p155
      %p162 = scmp.eq.s32.totalorder %s15, 1
      %p163 = por %p161, %p162
      %p164 = scmp.ne.s32.totalorder %s156, %s159
      %p165 = scmp.eq.s32.totalorder %s15, 0
      %p166 = por %p164, %p165
      %p167 = scmp.ne.s32.totalorder %s156, %s159
      %p168 = scmp.eq.s32.totalorder %s20, 1
      %p169 = por %p167, %p168
      %p170 = scmp.ne.s32.totalorder %s159, %s160
      %p171 = scmp.eq.s32.totalorder %s20, 0
      %p172 = por %p170, %p171
      %p173 = scmp.ne.s32.totalorder %s159, %s160
      %p174 = scmp.eq.s32.totalorder %s21, 1
      %p175 = por %p173, %p174
      %p177 = scmp.ne.s32.totalorder %s160, %s176
      %p178 = scmp.eq.s32.totalorder %s21, 0
      %p179 = por %p177, %p178
      %p180 = scmp.le.s32.totalorder 1, %s15
      %p181 = scmp.lt.s32.totalorder %s15, 3
      %p182 = pnand %p180, %p181
      %p183 = pneg %p182
      // Predicated region
      $region9: #{tpu_custom_call.1} parent=5 // pred_check
        _
      $region10: #{tpu_custom_call.1} parent=5 // pred_check_branch
        %185 = sbr.rel (%p182) target = $region12
      $region11: #{tpu_custom_call.1} parent=5 // pred_region
        %s186 = ssub.s32 %s15, 1
        // Predicated region
        $region13: #{tpu_custom_call.1} parent=11 // pred_check
          %p187 = pneg %p62
        $region14: #{tpu_custom_call.1} parent=11 // pred_check_branch
          %189 = sbr.rel (%p187) target = $region16
        $region15: #{tpu_custom_call.1} parent=11 // pred_region
          _
        $region16: #{tpu_custom_call.1} parent=11 // pred_fallthru
          _
        // Predicated region
        $region17: #{tpu_custom_call.1} parent=11 // pred_check
          %p190 = pneg %p83
        $region18: #{tpu_custom_call.1} parent=11 // pred_check_branch
          %192 = sbr.rel (%p190) target = $region20
        $region19: #{tpu_custom_call.1} parent=11 // pred_region
          _
        $region20: #{tpu_custom_call.1} parent=11 // pred_fallthru
          _
        // Predicated region
        $region21: #{tpu_custom_call.1} parent=11 // pred_check
          %p193 = pneg %p104
        $region22: #{tpu_custom_call.1} parent=11 // pred_check_branch
          %195 = sbr.rel (%p193) target = $region24
        $region23: #{tpu_custom_call.1} parent=11 // pred_region
          _
        $region24: #{tpu_custom_call.1} parent=11 // pred_fallthru
          _
        // Predicated region
        $region25: #{tpu_custom_call.1} parent=11 // pred_check
          %p196 = pneg %p125
        $region26: #{tpu_custom_call.1} parent=11 // pred_check_branch
          %198 = sbr.rel (%p196) target = $region28
        $region27: #{tpu_custom_call.1} parent=11 // pred_region
          _
        $region28: #{tpu_custom_call.1} parent=11 // pred_fallthru
          _
        // Predicated region
        $region29: #{tpu_custom_call.1} parent=11 // pred_check
          %p199 = pneg %p146
        $region30: #{tpu_custom_call.1} parent=11 // pred_check_branch
          %201 = sbr.rel (%p199) target = $region32
        $region31: #{tpu_custom_call.1} parent=11 // pred_region
          _
        $region32: #{tpu_custom_call.1} parent=11 // pred_fallthru
          _
      $region12: #{tpu_custom_call.1} parent=5 // pred_fallthru
        _
      %p202 = scmp.lt.s32.totalorder %s15, 2
      // Predicated region
      $region33: #{tpu_custom_call.1} parent=5 // pred_check
        %p203 = pneg %p202
      $region34: #{tpu_custom_call.1} parent=5 // pred_check_branch
        %205 = sbr.rel (%p203) target = $region36
      $region35: #{tpu_custom_call.1} parent=5 // pred_region
        // Predicated region
        $region37: #{tpu_custom_call.1} parent=35 // pred_check
          %p206 = pneg %p35
        $region38: #{tpu_custom_call.1} parent=35 // pred_check_branch
          %208 = sbr.rel (%p206) target = $region40
        $region39: #{tpu_custom_call.1} parent=35 // pred_region
          %p209 = scmp.lt.s32.totalorder %s15, 1
          %s210 = scalar_select %p209, %s15, 1
          %s211 = smul.addr %s210, 8
          %s212 = smul.addr %s211, 4
          %s213 = scalar_lea.vmem %s0, %s212
        $region40: #{tpu_custom_call.1} parent=35 // pred_fallthru
          _
      $region36: #{tpu_custom_call.1} parent=5 // pred_fallthru
        _
      %p214 = scmp.le.s32.totalorder 1, %s15
      %p215 = scmp.lt.s32.totalorder %s15, 3
      %p216 = pnand %p214, %p215
      %p217 = pneg %p216
      // Predicated region
      $region41: #{tpu_custom_call.1} parent=5 // pred_check
        _
      $region42: #{tpu_custom_call.1} parent=5 // pred_check_branch
        %219 = sbr.rel (%p216) target = $region44
      $region43: #{tpu_custom_call.1} parent=5 // pred_region
        %s220 = ssub.s32 %s15, 1
        %p221 = scmp.lt.s32.totalorder %s20, 1
        %s222 = scalar_select %p221, %s20, 1
        %s223 = smul.addr %s222, 8
        %s224 = smul.addr %s223, 4
        %s225 = scalar_lea.vmem %s0, %s224
        %p226 = pneg %p41
        %p227 = pneg %p38
        %p228 = pneg %p62
        %p229 = pneg %p59
        %p230 = pneg %p83
        %p231 = pneg %p80
        %p232 = pneg %p104
        %p233 = pneg %p101
        %p234 = pneg %p125
        %p235 = pneg %p122
        %p236 = pneg %p146
        %p237 = pneg %p143
        %p238 = pneg %p172
        %p239 = pneg %p169
        %s240 = sand.u32 %s159, 1
        %s241 = scalar_lea.sflag [#allocation3], %s240
        %s242 = sand.u32 %s159, 1
        %s243 = smul.addr %s242, 64
        %s244 = scalar_lea.vmem [#allocation2], %s243
        %p245 = scmp.lt.s32.totalorder %s20, 1
        %s246 = scalar_select %p245, %s20, 1
        %s247 = smul.addr %s246, 8
        %s248 = smul.addr %s247, 4
        %s249 = scalar_lea.vmem %s0, %s248
        %v251 = vld [vmem:[%s1] sm:$0xf]
        %v252 = vld [vmem:[%s1 + $0x4] sm:$0xf]
        %v253 = vld [vmem:[%s1 + $0x8] sm:$0xf]
        %v254 = vld [vmem:[%s1 + $0xc] sm:$0xf]
        %v255 = vld [vmem:[%s1 + $0x10] sm:$0xf]
        %v256 = vld [vmem:[%s1 + $0x14] sm:$0xf]
        %v257 = vld [vmem:[%s1 + $0x18] sm:$0xf]
        %v258 = vld [vmem:[%s1 + $0x1c] sm:$0xf]
        %v259 = vld [vmem:[%s1 + $0x20] sm:$0xf]
        %v260 = vld [vmem:[%s1 + $0x24] sm:$0xf]
        %v261 = vld [vmem:[%s1 + $0x28] sm:$0xf]
        %v262 = vld [vmem:[%s1 + $0x2c] sm:$0xf]
        %v263 = vld [vmem:[%s1 + $0x30] sm:$0xf]
        %v264 = vld [vmem:[%s1 + $0x34] sm:$0xf]
        %v265 = vld [vmem:[%s1 + $0x38] sm:$0xf]
        %v266 = vld [vmem:[%s1 + $0x3c] sm:$0xf]
        %v267 = vld [vmem:[%s1 + $0x40] sm:$0xf]
        %v268 = vld [vmem:[%s1 + $0x44] sm:$0xf]
        %v269 = vld [vmem:[%s1 + $0x48] sm:$0xf]
        %v270 = vld [vmem:[%s1 + $0x4c] sm:$0xf]
        %v271 = vld [vmem:[%s1 + $0x50] sm:$0xf]
        %v272 = vld [vmem:[%s1 + $0x54] sm:$0xf]
        %v273 = vld [vmem:[%s1 + $0x58] sm:$0xf]
        %v274 = vld [vmem:[%s1 + $0x5c] sm:$0xf]
        %v275 = vld [vmem:[%s1 + $0x60] sm:$0xf]
        %v276 = vld [vmem:[%s1 + $0x64] sm:$0xf]
        %v277 = vld [vmem:[%s1 + $0x68] sm:$0xf]
        %v278 = vld [vmem:[%s1 + $0x6c] sm:$0xf]
        %v279 = vld [vmem:[%s1 + $0x70] sm:$0xf]
        %v280 = vld [vmem:[%s1 + $0x74] sm:$0xf]
        %v281 = vld [vmem:[%s1 + $0x78] sm:$0xf]
        %v282 = vld [vmem:[%s1 + $0x7c] sm:$0xf]
        %v283 = vld [vmem:[%s1 + $0x80] sm:$0xf]
        %v284 = vld [vmem:[%s1 + $0x84] sm:$0xf]
        %v285 = vld [vmem:[%s1 + $0x88] sm:$0xf]
        %v286 = vld [vmem:[%s1 + $0x8c] sm:$0xf]
        %v287 = vld [vmem:[%s1 + $0x90] sm:$0xf]
        %v288 = vld [vmem:[%s1 + $0x94] sm:$0xf]
        %v289 = vld [vmem:[%s1 + $0x98] sm:$0xf]
        %v290 = vld [vmem:[%s1 + $0x9c] sm:$0xf]
        %v291 = vld [vmem:[%s1 + $0xa0] sm:$0xf]
        %v292 = vld [vmem:[%s1 + $0xa4] sm:$0xf]
        %v293 = vld [vmem:[%s1 + $0xa8] sm:$0xf]
        %v294 = vld [vmem:[%s1 + $0xac] sm:$0xf]
        %v295 = vld [vmem:[%s1 + $0xb0] sm:$0xf]
        %v296 = vld [vmem:[%s1 + $0xb4] sm:$0xf]
        %v297 = vld [vmem:[%s1 + $0xb8] sm:$0xf]
        %v298 = vld [vmem:[%s1 + $0xbc] sm:$0xf]
        %v299 = vld [vmem:[%s2] sm:$0xf]
        %v300 = vld [vmem:[%s2 + $0x4] sm:$0xf]
        %v301 = vld [vmem:[%s2 + $0x8] sm:$0xf]
        %v302 = vld [vmem:[%s2 + $0xc] sm:$0xf]
        %v303 = vld [vmem:[%s3] sm:$0xff]
        %v304 = vld [vmem:[%s3 + $0x8] sm:$0xff]
        %v305 = vld [vmem:[%s3 + $0x10] sm:$0xff]
        %v306 = vld [vmem:[%s3 + $0x18] sm:$0xff]
        %v307 = vld [vmem:[%s4] sm:$0xff]
        %v308 = vld [vmem:[%s4 + $0x8] sm:$0xff]
        %v309 = vld [vmem:[%s4 + $0x10] sm:$0xff]
        %v310 = vld [vmem:[%s4 + $0x18] sm:$0xff]
        %v311 = vld [vmem:[%s5] sm:$0xff]
        %v312 = vld [vmem:[%s5 + $0x8] sm:$0xff]
        %v313 = vld [vmem:[%s5 + $0x10] sm:$0xff]
        %v314 = vld [vmem:[%s5 + $0x18] sm:$0xff]
        %v315 = vlaneseq
        %v316 = vshrl.u32 %v315, 7
        %v317 = vadd.s32 %v316, 8
        %v318 = vadd.s32 %v316, 16
        %v319 = vadd.s32 %v316, 24
        %v320 = vadd.s32 %v316, 32
        %v321 = vadd.s32 %v316, 40
        %v322 = vadd.s32 %v316, 48
        %v323 = vadd.s32 %v316, 56
        %v324 = vadd.s32 %v316, 64
        %v325 = vadd.s32 %v316, 72
        %v326 = vadd.s32 %v316, 80
        %v327 = vadd.s32 %v316, 88
        %v328 = vadd.s32 %v316, 96
        %v329 = vadd.s32 %v316, 104
        %v330 = vadd.s32 %v316, 112
        %v331 = vadd.s32 %v316, 120
        %v332 = vlaneseq
        %v333 = vand.u32 %v332, 127
        %vm334 = vcmp.ge.s32.totalorder %v316, 0
        %vm335 = vcmp.ge.s32.totalorder %v317, 0
        %vm336 = vcmp.ge.s32.totalorder %v318, 0
        %vm337 = vcmp.ge.s32.totalorder %v319, 0
        %vm338 = vcmp.ge.s32.totalorder %v320, 0
        %vm339 = vcmp.ge.s32.totalorder %v321, 0
        %vm340 = vcmp.ge.s32.totalorder %v322, 0
        %vm341 = vcmp.ge.s32.totalorder %v323, 0
        %vm342 = vcmp.ge.s32.totalorder %v324, 0
        %vm343 = vcmp.ge.s32.totalorder %v325, 0
        %vm344 = vcmp.ge.s32.totalorder %v326, 0
        %vm345 = vcmp.ge.s32.totalorder %v327, 0
        %vm346 = vcmp.ge.s32.totalorder %v328, 0
        %vm347 = vcmp.ge.s32.totalorder %v329, 0
        %vm348 = vcmp.ge.s32.totalorder %v330, 0
        %vm349 = vcmp.ge.s32.totalorder %v331, 0
        %vm350 = vcmp.lt.s32.totalorder %v316, 32
        %vm351 = vcmp.lt.s32.totalorder %v317, 32
        %vm352 = vcmp.lt.s32.totalorder %v318, 32
        %vm353 = vcmp.lt.s32.totalorder %v319, 32
        %vm354 = vcmp.lt.s32.totalorder %v320, 32
        %vm355 = vcmp.lt.s32.totalorder %v321, 32
        %vm356 = vcmp.lt.s32.totalorder %v322, 32
        %vm357 = vcmp.lt.s32.totalorder %v323, 32
        %vm358 = vcmp.lt.s32.totalorder %v324, 32
        %vm359 = vcmp.lt.s32.totalorder %v325, 32
        %vm360 = vcmp.lt.s32.totalorder %v326, 32
        %vm361 = vcmp.lt.s32.totalorder %v327, 32
        %vm362 = vcmp.lt.s32.totalorder %v328, 32
        %vm363 = vcmp.lt.s32.totalorder %v329, 32
        %vm364 = vcmp.lt.s32.totalorder %v330, 32
        %vm365 = vcmp.lt.s32.totalorder %v331, 32
        %vm366 = vmand %vm334, %vm350
        %vm367 = vmand %vm335, %vm351
        %vm368 = vmand %vm336, %vm352
        %vm369 = vmand %vm337, %vm353
        %vm370 = vmand %vm338, %vm354
        %vm371 = vmand %vm339, %vm355
        %vm372 = vmand %vm340, %vm356
        %vm373 = vmand %vm341, %vm357
        %vm374 = vmand %vm342, %vm358
        %vm375 = vmand %vm343, %vm359
        %vm376 = vmand %vm344, %vm360
        %vm377 = vmand %vm345, %vm361
        %vm378 = vmand %vm346, %vm362
        %vm379 = vmand %vm347, %vm363
        %vm380 = vmand %vm348, %vm364
        %vm381 = vmand %vm349, %vm365
        %vm382 = vcmp.ge.s32.totalorder %v333, 0
        %vm383 = vmand %vm366, %vm382
        %vm384 = vmand %vm367, %vm382
        %vm385 = vmand %vm368, %vm382
        %vm386 = vmand %vm369, %vm382
        %vm387 = vmand %vm370, %vm382
        %vm388 = vmand %vm371, %vm382
        %vm389 = vmand %vm372, %vm382
        %vm390 = vmand %vm373, %vm382
        %vm391 = vmand %vm374, %vm382
        %vm392 = vmand %vm375, %vm382
        %vm393 = vmand %vm376, %vm382
        %vm394 = vmand %vm377, %vm382
        %vm395 = vmand %vm378, %vm382
        %vm396 = vmand %vm379, %vm382
        %vm397 = vmand %vm380, %vm382
        %vm398 = vmand %vm381, %vm382
        %vm399 = vcmp.lt.s32.totalorder %v333, 32
        %vm400 = vmand %vm383, %vm399
        %vm401 = vmand %vm384, %vm399
        %vm402 = vmand %vm385, %vm399
        %vm403 = vmand %vm386, %vm399
        %vm404 = vmand %vm387, %vm399
        %vm405 = vmand %vm388, %vm399
        %vm406 = vmand %vm389, %vm399
        %vm407 = vmand %vm390, %vm399
        %vm408 = vmand %vm391, %vm399
        %vm409 = vmand %vm392, %vm399
        %vm410 = vmand %vm393, %vm399
        %vm411 = vmand %vm394, %vm399
        %vm412 = vmand %vm395, %vm399
        %vm413 = vmand %vm396, %vm399
        %vm414 = vmand %vm397, %vm399
        %vm415 = vmand %vm398, %vm399
        %v416 = vsel %vm400, 1, 0
        %v417 = vsel %vm401, 1, 0
        %v418 = vsel %vm402, 1, 0
        %v419 = vsel %vm403, 1, 0
        %v420 = vsel %vm404, 1, 0
        %v421 = vsel %vm405, 1, 0
        %v422 = vsel %vm406, 1, 0
        %v423 = vsel %vm407, 1, 0
        %v424 = vsel %vm408, 1, 0
        %v425 = vsel %vm409, 1, 0
        %v426 = vsel %vm410, 1, 0
        %v427 = vsel %vm411, 1, 0
        %v428 = vsel %vm412, 1, 0
        %v429 = vsel %vm413, 1, 0
        %v430 = vsel %vm414, 1, 0
        %v431 = vsel %vm415, 1, 0
        %v432 = vcvt.s32.f32 %v416
        %v433 = vcvt.s32.f32 %v417
        %v434 = vcvt.s32.f32 %v418
        %v435 = vcvt.s32.f32 %v419
        %v436 = vcvt.s32.f32 %v420
        %v437 = vcvt.s32.f32 %v421
        %v438 = vcvt.s32.f32 %v422
        %v439 = vcvt.s32.f32 %v423
        %v440 = vcvt.s32.f32 %v424
        %v441 = vcvt.s32.f32 %v425
        %v442 = vcvt.s32.f32 %v426
        %v443 = vcvt.s32.f32 %v427
        %v444 = vcvt.s32.f32 %v428
        %v445 = vcvt.s32.f32 %v429
        %v446 = vcvt.s32.f32 %v430
        %v447 = vcvt.s32.f32 %v431
        %v448 = vadd.f32 %v432, 0.0
        %v449 = vadd.f32 %v433, 0.0
        %v450 = vadd.f32 %v434, 0.0
        %v451 = vadd.f32 %v435, 0.0
        %v452 = vadd.f32 %v436, 0.0
        %v453 = vadd.f32 %v437, 0.0
        %v454 = vadd.f32 %v438, 0.0
        %v455 = vadd.f32 %v439, 0.0
        %v456 = vadd.f32 %v440, 0.0
        %v457 = vadd.f32 %v441, 0.0
        %v458 = vadd.f32 %v442, 0.0
        %v459 = vadd.f32 %v443, 0.0
        %v460 = vadd.f32 %v444, 0.0
        %v461 = vadd.f32 %v445, 0.0
        %v462 = vadd.f32 %v446, 0.0
        %v463 = vadd.f32 %v447, 0.0
        %vm464 = vcmp.ge.s32.totalorder %v316, 32
        %vm465 = vcmp.ge.s32.totalorder %v317, 32
        %vm466 = vcmp.ge.s32.totalorder %v318, 32
        %vm467 = vcmp.ge.s32.totalorder %v319, 32
        %vm468 = vcmp.ge.s32.totalorder %v320, 32
        %vm469 = vcmp.ge.s32.totalorder %v321, 32
        %vm470 = vcmp.ge.s32.totalorder %v322, 32
        %vm471 = vcmp.ge.s32.totalorder %v323, 32
        %vm472 = vcmp.ge.s32.totalorder %v324, 32
        %vm473 = vcmp.ge.s32.totalorder %v325, 32
        %vm474 = vcmp.ge.s32.totalorder %v326, 32
        %vm475 = vcmp.ge.s32.totalorder %v327, 32
        %vm476 = vcmp.ge.s32.totalorder %v328, 32
        %vm477 = vcmp.ge.s32.totalorder %v329, 32
        %vm478 = vcmp.ge.s32.totalorder %v330, 32
        %vm479 = vcmp.ge.s32.totalorder %v331, 32
        %vm480 = vcmp.lt.s32.totalorder %v316, 64
        %vm481 = vcmp.lt.s32.totalorder %v317, 64
        %vm482 = vcmp.lt.s32.totalorder %v318, 64
        %vm483 = vcmp.lt.s32.totalorder %v319, 64
        %vm484 = vcmp.lt.s32.totalorder %v320, 64
        %vm485 = vcmp.lt.s32.totalorder %v321, 64
        %vm486 = vcmp.lt.s32.totalorder %v322, 64
        %vm487 = vcmp.lt.s32.totalorder %v323, 64
        %vm488 = vcmp.lt.s32.totalorder %v324, 64
        %vm489 = vcmp.lt.s32.totalorder %v325, 64
        %vm490 = vcmp.lt.s32.totalorder %v326, 64
        %vm491 = vcmp.lt.s32.totalorder %v327, 64
        %vm492 = vcmp.lt.s32.totalorder %v328, 64
        %vm493 = vcmp.lt.s32.totalorder %v329, 64
        %vm494 = vcmp.lt.s32.totalorder %v330, 64
        %vm495 = vcmp.lt.s32.totalorder %v331, 64
        %vm496 = vmand %vm464, %vm480
        %vm497 = vmand %vm465, %vm481
        %vm498 = vmand %vm466, %vm482
        %vm499 = vmand %vm467, %vm483
        %vm500 = vmand %vm468, %vm484
        %vm501 = vmand %vm469, %vm485
        %vm502 = vmand %vm470, %vm486
        %vm503 = vmand %vm471, %vm487
        %vm504 = vmand %vm472, %vm488
        %vm505 = vmand %vm473, %vm489
        %vm506 = vmand %vm474, %vm490
        %vm507 = vmand %vm475, %vm491
        %vm508 = vmand %vm476, %vm492
        %vm509 = vmand %vm477, %vm493
        %vm510 = vmand %vm478, %vm494
        %vm511 = vmand %vm479, %vm495
        %vm512 = vcmp.ge.s32.totalorder %v333, 32
        %vm513 = vmand %vm496, %vm512
        %vm514 = vmand %vm497, %vm512
        %vm515 = vmand %vm498, %vm512
        %vm516 = vmand %vm499, %vm512
        %vm517 = vmand %vm500, %vm512
        %vm518 = vmand %vm501, %vm512
        %vm519 = vmand %vm502, %vm512
        %vm520 = vmand %vm503, %vm512
        %vm521 = vmand %vm504, %vm512
        %vm522 = vmand %vm505, %vm512
        %vm523 = vmand %vm506, %vm512
        %vm524 = vmand %vm507, %vm512
        %vm525 = vmand %vm508, %vm512
        %vm526 = vmand %vm509, %vm512
        %vm527 = vmand %vm510, %vm512
        %vm528 = vmand %vm511, %vm512
        %vm529 = vcmp.lt.s32.totalorder %v333, 64
        %vm530 = vmand %vm513, %vm529
        %vm531 = vmand %vm514, %vm529
        %vm532 = vmand %vm515, %vm529
        %vm533 = vmand %vm516, %vm529
        %vm534 = vmand %vm517, %vm529
        %vm535 = vmand %vm518, %vm529
        %vm536 = vmand %vm519, %vm529
        %vm537 = vmand %vm520, %vm529
        %vm538 = vmand %vm521, %vm529
        %vm539 = vmand %vm522, %vm529
        %vm540 = vmand %vm523, %vm529
        %vm541 = vmand %vm524, %vm529
        %vm542 = vmand %vm525, %vm529
        %vm543 = vmand %vm526, %vm529
        %vm544 = vmand %vm527, %vm529
        %vm545 = vmand %vm528, %vm529
        %v546 = vsel %vm530, 1, 0
        %v547 = vsel %vm531, 1, 0
        %v548 = vsel %vm532, 1, 0
        %v549 = vsel %vm533, 1, 0
        %v550 = vsel %vm534, 1, 0
        %v551 = vsel %vm535, 1, 0
        %v552 = vsel %vm536, 1, 0
        %v553 = vsel %vm537, 1, 0
        %v554 = vsel %vm538, 1, 0
        %v555 = vsel %vm539, 1, 0
        %v556 = vsel %vm540, 1, 0
        %v557 = vsel %vm541, 1, 0
        %v558 = vsel %vm542, 1, 0
        %v559 = vsel %vm543, 1, 0
        %v560 = vsel %vm544, 1, 0
        %v561 = vsel %vm545, 1, 0
        %v562 = vcvt.s32.f32 %v546
        %v563 = vcvt.s32.f32 %v547
        %v564 = vcvt.s32.f32 %v548
        %v565 = vcvt.s32.f32 %v549
        %v566 = vcvt.s32.f32 %v550
        %v567 = vcvt.s32.f32 %v551
        %v568 = vcvt.s32.f32 %v552
        %v569 = vcvt.s32.f32 %v553
        %v570 = vcvt.s32.f32 %v554
        %v571 = vcvt.s32.f32 %v555
        %v572 = vcvt.s32.f32 %v556
        %v573 = vcvt.s32.f32 %v557
        %v574 = vcvt.s32.f32 %v558
        %v575 = vcvt.s32.f32 %v559
        %v576 = vcvt.s32.f32 %v560
        %v577 = vcvt.s32.f32 %v561
        %v578 = vadd.f32 %v448, %v562
        %v579 = vadd.f32 %v449, %v563
        %v580 = vadd.f32 %v450, %v564
        %v581 = vadd.f32 %v451, %v565
        %v582 = vadd.f32 %v452, %v566
        %v583 = vadd.f32 %v453, %v567
        %v584 = vadd.f32 %v454, %v568
        %v585 = vadd.f32 %v455, %v569
        %v586 = vadd.f32 %v456, %v570
        %v587 = vadd.f32 %v457, %v571
        %v588 = vadd.f32 %v458, %v572
        %v589 = vadd.f32 %v459, %v573
        %v590 = vadd.f32 %v460, %v574
        %v591 = vadd.f32 %v461, %v575
        %v592 = vadd.f32 %v462, %v576
        %v593 = vadd.f32 %v463, %v577
        %vm594 = vcmp.ge.s32.totalorder %v316, 64
        %vm595 = vcmp.ge.s32.totalorder %v317, 64
        %vm596 = vcmp.ge.s32.totalorder %v318, 64
        %vm597 = vcmp.ge.s32.totalorder %v319, 64
        %vm598 = vcmp.ge.s32.totalorder %v320, 64
        %vm599 = vcmp.ge.s32.totalorder %v321, 64
        %vm600 = vcmp.ge.s32.totalorder %v322, 64
        %vm601 = vcmp.ge.s32.totalorder %v323, 64
        %vm602 = vcmp.ge.s32.totalorder %v324, 64
        %vm603 = vcmp.ge.s32.totalorder %v325, 64
        %vm604 = vcmp.ge.s32.totalorder %v326, 64
        %vm605 = vcmp.ge.s32.totalorder %v327, 64
        %vm606 = vcmp.ge.s32.totalorder %v328, 64
        %vm607 = vcmp.ge.s32.totalorder %v329, 64
        %vm608 = vcmp.ge.s32.totalorder %v330, 64
        %vm609 = vcmp.ge.s32.totalorder %v331, 64
        %vm610 = vcmp.lt.s32.totalorder %v316, 96
        %vm611 = vcmp.lt.s32.totalorder %v317, 96
        %vm612 = vcmp.lt.s32.totalorder %v318, 96
        %vm613 = vcmp.lt.s32.totalorder %v319, 96
        %vm614 = vcmp.lt.s32.totalorder %v320, 96
        %vm615 = vcmp.lt.s32.totalorder %v321, 96
        %vm616 = vcmp.lt.s32.totalorder %v322, 96
        %vm617 = vcmp.lt.s32.totalorder %v323, 96
        %vm618 = vcmp.lt.s32.totalorder %v324, 96
        %vm619 = vcmp.lt.s32.totalorder %v325, 96
        %vm620 = vcmp.lt.s32.totalorder %v326, 96
        %vm621 = vcmp.lt.s32.totalorder %v327, 96
        %vm622 = vcmp.lt.s32.totalorder %v328, 96
        %vm623 = vcmp.lt.s32.totalorder %v329, 96
        %vm624 = vcmp.lt.s32.totalorder %v330, 96
        %vm625 = vcmp.lt.s32.totalorder %v331, 96
        %vm626 = vmand %vm594, %vm610
        %vm627 = vmand %vm595, %vm611
        %vm628 = vmand %vm596, %vm612
        %vm629 = vmand %vm597, %vm613
        %vm630 = vmand %vm598, %vm614
        %vm631 = vmand %vm599, %vm615
        %vm632 = vmand %vm600, %vm616
        %vm633 = vmand %vm601, %vm617
        %vm634 = vmand %vm602, %vm618
        %vm635 = vmand %vm603, %vm619
        %vm636 = vmand %vm604, %vm620
        %vm637 = vmand %vm605, %vm621
        %vm638 = vmand %vm606, %vm622
        %vm639 = vmand %vm607, %vm623
        %vm640 = vmand %vm608, %vm624
        %vm641 = vmand %vm609, %vm625
        %vm642 = vcmp.ge.s32.totalorder %v333, 64
        %vm643 = vmand %vm626, %vm642
        %vm644 = vmand %vm627, %vm642
        %vm645 = vmand %vm628, %vm642
        %vm646 = vmand %vm629, %vm642
        %vm647 = vmand %vm630, %vm642
        %vm648 = vmand %vm631, %vm642
        %vm649 = vmand %vm632, %vm642
        %vm650 = vmand %vm633, %vm642
        %vm651 = vmand %vm634, %vm642
        %vm652 = vmand %vm635, %vm642
        %vm653 = vmand %vm636, %vm642
        %vm654 = vmand %vm637, %vm642
        %vm655 = vmand %vm638, %vm642
        %vm656 = vmand %vm639, %vm642
        %vm657 = vmand %vm640, %vm642
        %vm658 = vmand %vm641, %vm642
        %vm659 = vcmp.lt.s32.totalorder %v333, 96
        %vm660 = vmand %vm643, %vm659
        %vm661 = vmand %vm644, %vm659
        %vm662 = vmand %vm645, %vm659
        %vm663 = vmand %vm646, %vm659
        %vm664 = vmand %vm647, %vm659
        %vm665 = vmand %vm648, %vm659
        %vm666 = vmand %vm649, %vm659
        %vm667 = vmand %vm650, %vm659
        %vm668 = vmand %vm651, %vm659
        %vm669 = vmand %vm652, %vm659
        %vm670 = vmand %vm653, %vm659
        %vm671 = vmand %vm654, %vm659
        %vm672 = vmand %vm655, %vm659
        %vm673 = vmand %vm656, %vm659
        %vm674 = vmand %vm657, %vm659
        %vm675 = vmand %vm658, %vm659
        %v676 = vsel %vm660, 1, 0
        %v677 = vsel %vm661, 1, 0
        %v678 = vsel %vm662, 1, 0
        %v679 = vsel %vm663, 1, 0
        %v680 = vsel %vm664, 1, 0
        %v681 = vsel %vm665, 1, 0
        %v682 = vsel %vm666, 1, 0
        %v683 = vsel %vm667, 1, 0
        %v684 = vsel %vm668, 1, 0
        %v685 = vsel %vm669, 1, 0
        %v686 = vsel %vm670, 1, 0
        %v687 = vsel %vm671, 1, 0
        %v688 = vsel %vm672, 1, 0
        %v689 = vsel %vm673, 1, 0
        %v690 = vsel %vm674, 1, 0
        %v691 = vsel %vm675, 1, 0
        %v692 = vcvt.s32.f32 %v676
        %v693 = vcvt.s32.f32 %v677
        %v694 = vcvt.s32.f32 %v678
        %v695 = vcvt.s32.f32 %v679
        %v696 = vcvt.s32.f32 %v680
        %v697 = vcvt.s32.f32 %v681
        %v698 = vcvt.s32.f32 %v682
        %v699 = vcvt.s32.f32 %v683
        %v700 = vcvt.s32.f32 %v684
        %v701 = vcvt.s32.f32 %v685
        %v702 = vcvt.s32.f32 %v686
        %v703 = vcvt.s32.f32 %v687
        %v704 = vcvt.s32.f32 %v688
        %v705 = vcvt.s32.f32 %v689
        %v706 = vcvt.s32.f32 %v690
        %v707 = vcvt.s32.f32 %v691
        %v708 = vadd.f32 %v578, %v692
        %v709 = vadd.f32 %v579, %v693
        %v710 = vadd.f32 %v580, %v694
        %v711 = vadd.f32 %v581, %v695
        %v712 = vadd.f32 %v582, %v696
        %v713 = vadd.f32 %v583, %v697
        %v714 = vadd.f32 %v584, %v698
        %v715 = vadd.f32 %v585, %v699
        %v716 = vadd.f32 %v586, %v700
        %v717 = vadd.f32 %v587, %v701
        %v718 = vadd.f32 %v588, %v702
        %v719 = vadd.f32 %v589, %v703
        %v720 = vadd.f32 %v590, %v704
        %v721 = vadd.f32 %v591, %v705
        %v722 = vadd.f32 %v592, %v706
        %v723 = vadd.f32 %v593, %v707
        %vm724 = vcmp.ge.s32.totalorder %v316, 96
        %vm725 = vcmp.ge.s32.totalorder %v317, 96
        %vm726 = vcmp.ge.s32.totalorder %v318, 96
        %vm727 = vcmp.ge.s32.totalorder %v319, 96
        %vm728 = vcmp.ge.s32.totalorder %v320, 96
        %vm729 = vcmp.ge.s32.totalorder %v321, 96
        %vm730 = vcmp.ge.s32.totalorder %v322, 96
        %vm731 = vcmp.ge.s32.totalorder %v323, 96
        %vm732 = vcmp.ge.s32.totalorder %v324, 96
        %vm733 = vcmp.ge.s32.totalorder %v325, 96
        %vm734 = vcmp.ge.s32.totalorder %v326, 96
        %vm735 = vcmp.ge.s32.totalorder %v327, 96
        %vm736 = vcmp.ge.s32.totalorder %v328, 96
        %vm737 = vcmp.ge.s32.totalorder %v329, 96
        %vm738 = vcmp.ge.s32.totalorder %v330, 96
        %vm739 = vcmp.ge.s32.totalorder %v331, 96
        %vm740 = vcmp.lt.s32.totalorder %v316, 128
        %vm741 = vcmp.lt.s32.totalorder %v317, 128
        %vm742 = vcmp.lt.s32.totalorder %v318, 128
        %vm743 = vcmp.lt.s32.totalorder %v319, 128
        %vm744 = vcmp.lt.s32.totalorder %v320, 128
        %vm745 = vcmp.lt.s32.totalorder %v321, 128
        %vm746 = vcmp.lt.s32.totalorder %v322, 128
        %vm747 = vcmp.lt.s32.totalorder %v323, 128
        %vm748 = vcmp.lt.s32.totalorder %v324, 128
        %vm749 = vcmp.lt.s32.totalorder %v325, 128
        %vm750 = vcmp.lt.s32.totalorder %v326, 128
        %vm751 = vcmp.lt.s32.totalorder %v327, 128
        %vm752 = vcmp.lt.s32.totalorder %v328, 128
        %vm753 = vcmp.lt.s32.totalorder %v329, 128
        %vm754 = vcmp.lt.s32.totalorder %v330, 128
        %vm755 = vcmp.lt.s32.totalorder %v331, 128
        %vm756 = vmand %vm724, %vm740
        %vm757 = vmand %vm725, %vm741
        %vm758 = vmand %vm726, %vm742
        %vm759 = vmand %vm727, %vm743
        %vm760 = vmand %vm728, %vm744
        %vm761 = vmand %vm729, %vm745
        %vm762 = vmand %vm730, %vm746
        %vm763 = vmand %vm731, %vm747
        %vm764 = vmand %vm732, %vm748
        %vm765 = vmand %vm733, %vm749
        %vm766 = vmand %vm734, %vm750
        %vm767 = vmand %vm735, %vm751
        %vm768 = vmand %vm736, %vm752
        %vm769 = vmand %vm737, %vm753
        %vm770 = vmand %vm738, %vm754
        %vm771 = vmand %vm739, %vm755
        %vm772 = vcmp.ge.s32.totalorder %v333, 96
        %vm773 = vmand %vm756, %vm772
        %vm774 = vmand %vm757, %vm772
        %vm775 = vmand %vm758, %vm772
        %vm776 = vmand %vm759, %vm772
        %vm777 = vmand %vm760, %vm772
        %vm778 = vmand %vm761, %vm772
        %vm779 = vmand %vm762, %vm772
        %vm780 = vmand %vm763, %vm772
        %vm781 = vmand %vm764, %vm772
        %vm782 = vmand %vm765, %vm772
        %vm783 = vmand %vm766, %vm772
        %vm784 = vmand %vm767, %vm772
        %vm785 = vmand %vm768, %vm772
        %vm786 = vmand %vm769, %vm772
        %vm787 = vmand %vm770, %vm772
        %vm788 = vmand %vm771, %vm772
        %vm789 = vcmp.lt.s32.totalorder %v333, 128
        %vm790 = vmand %vm773, %vm789
        %vm791 = vmand %vm774, %vm789
        %vm792 = vmand %vm775, %vm789
        %vm793 = vmand %vm776, %vm789
        %vm794 = vmand %vm777, %vm789
        %vm795 = vmand %vm778, %vm789
        %vm796 = vmand %vm779, %vm789
        %vm797 = vmand %vm780, %vm789
        %vm798 = vmand %vm781, %vm789
        %vm799 = vmand %vm782, %vm789
        %vm800 = vmand %vm783, %vm789
        %vm801 = vmand %vm784, %vm789
        %vm802 = vmand %vm785, %vm789
        %vm803 = vmand %vm786, %vm789
        %vm804 = vmand %vm787, %vm789
        %vm805 = vmand %vm788, %vm789
        %v806 = vsel %vm790, 1, 0
        %v807 = vsel %vm791, 1, 0
        %v808 = vsel %vm792, 1, 0
        %v809 = vsel %vm793, 1, 0
        %v810 = vsel %vm794, 1, 0
        %v811 = vsel %vm795, 1, 0
        %v812 = vsel %vm796, 1, 0
        %v813 = vsel %vm797, 1, 0
        %v814 = vsel %vm798, 1, 0
        %v815 = vsel %vm799, 1, 0
        %v816 = vsel %vm800, 1, 0
        %v817 = vsel %vm801, 1, 0
        %v818 = vsel %vm802, 1, 0
        %v819 = vsel %vm803, 1, 0
        %v820 = vsel %vm804, 1, 0
        %v821 = vsel %vm805, 1, 0
        %v822 = vcvt.s32.f32 %v806
        %v823 = vcvt.s32.f32 %v807
        %v824 = vcvt.s32.f32 %v808
        %v825 = vcvt.s32.f32 %v809
        %v826 = vcvt.s32.f32 %v810
        %v827 = vcvt.s32.f32 %v811
        %v828 = vcvt.s32.f32 %v812
        %v829 = vcvt.s32.f32 %v813
        %v830 = vcvt.s32.f32 %v814
        %v831 = vcvt.s32.f32 %v815
        %v832 = vcvt.s32.f32 %v816
        %v833 = vcvt.s32.f32 %v817
        %v834 = vcvt.s32.f32 %v818
        %v835 = vcvt.s32.f32 %v819
        %v836 = vcvt.s32.f32 %v820
        %v837 = vcvt.s32.f32 %v821
        %v838 = vadd.f32 %v708, %v822
        %v839 = vadd.f32 %v709, %v823
        %v840 = vadd.f32 %v710, %v824
        %v841 = vadd.f32 %v711, %v825
        %v842 = vadd.f32 %v712, %v826
        %v843 = vadd.f32 %v713, %v827
        %v844 = vadd.f32 %v714, %v828
        %v845 = vadd.f32 %v715, %v829
        %v846 = vadd.f32 %v716, %v830
        %v847 = vadd.f32 %v717, %v831
        %v848 = vadd.f32 %v718, %v832
        %v849 = vadd.f32 %v719, %v833
        %v850 = vadd.f32 %v720, %v834
        %v851 = vadd.f32 %v721, %v835
        %v852 = vadd.f32 %v722, %v836
        %v853 = vadd.f32 %v723, %v837
        %v854 = vld [vmem:[%s249] sm:$0xff]
        %v855 = vld [vmem:[%s249 + $0x8] sm:$0xff]
        %v856 = vld [vmem:[%s249 + $0x10] sm:$0xff]
        %v857 = vld [vmem:[%s249 + $0x18] sm:$0xff]
        %v906 = vunpack.c.l.b16 %v251
        %v907 = vunpack.c.l.b16 %v252
        %v908 = vunpack.c.l.b16 %v253
        %v909 = vunpack.c.l.b16 %v254
        %v910 = vunpack.c.l.b16 %v255
        %v911 = vunpack.c.l.b16 %v256
        %v912 = vunpack.c.l.b16 %v257
        %v913 = vunpack.c.l.b16 %v258
        %v914 = vunpack.c.l.b16 %v259
        %v915 = vunpack.c.l.b16 %v260
        %v916 = vunpack.c.l.b16 %v261
        %v917 = vunpack.c.l.b16 %v262
        %v918 = vunpack.c.l.b16 %v263
        %v919 = vunpack.c.l.b16 %v264
        %v920 = vunpack.c.l.b16 %v265
        %v921 = vunpack.c.l.b16 %v266
        %v922 = vunpack.c.l.b16 %v267
        %v923 = vunpack.c.l.b16 %v268
        %v924 = vunpack.c.l.b16 %v269
        %v925 = vunpack.c.l.b16 %v270
        %v926 = vunpack.c.l.b16 %v271
        %v927 = vunpack.c.l.b16 %v272
        %v928 = vunpack.c.l.b16 %v273
        %v929 = vunpack.c.l.b16 %v274
        %v930 = vunpack.c.l.b16 %v275
        %v931 = vunpack.c.l.b16 %v276
        %v932 = vunpack.c.l.b16 %v277
        %v933 = vunpack.c.l.b16 %v278
        %v934 = vunpack.c.l.b16 %v279
        %v935 = vunpack.c.l.b16 %v280
        %v936 = vunpack.c.l.b16 %v281
        %v937 = vunpack.c.l.b16 %v282
        %v938 = vunpack.c.l.b16 %v283
        %v939 = vunpack.c.l.b16 %v284
        %v940 = vunpack.c.l.b16 %v285
        %v941 = vunpack.c.l.b16 %v286
        %v942 = vunpack.c.l.b16 %v287
        %v943 = vunpack.c.l.b16 %v288
        %v944 = vunpack.c.l.b16 %v289
        %v945 = vunpack.c.l.b16 %v290
        %v946 = vunpack.c.l.b16 %v291
        %v947 = vunpack.c.l.b16 %v292
        %v948 = vunpack.c.l.b16 %v293
        %v949 = vunpack.c.l.b16 %v294
        %v950 = vunpack.c.l.b16 %v295
        %v951 = vunpack.c.l.b16 %v296
        %v952 = vunpack.c.l.b16 %v297
        %v953 = vunpack.c.l.b16 %v298
        %v954 = vpack.c.b16 %v907, %v906
        %v955 = vpack.c.b16 %v909, %v908
        %v956 = vpack.c.b16 %v911, %v910
        %v957 = vpack.c.b16 %v913, %v912
        %v958 = vpack.c.b16 %v915, %v914
        %v959 = vpack.c.b16 %v917, %v916
        %v960 = vpack.c.b16 %v919, %v918
        %v961 = vpack.c.b16 %v921, %v920
        %v962 = vpack.c.b16 %v923, %v922
        %v963 = vpack.c.b16 %v925, %v924
        %v964 = vpack.c.b16 %v927, %v926
        %v965 = vpack.c.b16 %v929, %v928
        %v966 = vpack.c.b16 %v931, %v930
        %v967 = vpack.c.b16 %v933, %v932
        %v968 = vpack.c.b16 %v935, %v934
        %v969 = vpack.c.b16 %v937, %v936
        %v970 = vpack.c.b16 %v939, %v938
        %v971 = vpack.c.b16 %v941, %v940
        %v972 = vpack.c.b16 %v943, %v942
        %v973 = vpack.c.b16 %v945, %v944
        %v974 = vpack.c.b16 %v947, %v946
        %v975 = vpack.c.b16 %v949, %v948
        %v976 = vpack.c.b16 %v951, %v950
        %v977 = vpack.c.b16 %v953, %v952
        %v982 = vunpack.c.l.b16 %v854
        %v983 = vunpack.c.h.b16 %v854
        %v984 = vunpack.c.l.b16 %v855
        %v985 = vunpack.c.h.b16 %v855
        %v986 = vunpack.c.l.b16 %v856
        %v987 = vunpack.c.h.b16 %v856
        %v988 = vunpack.c.l.b16 %v857
        %v989 = vunpack.c.h.b16 %v857
        %v990 = vpack.c.b16 %v984, %v982
        %v991 = vpack.c.b16 %v985, %v983
        %v992 = vpack.c.b16 %v988, %v986
        %v993 = vpack.c.b16 %v989, %v987
        %vm998 = vcmask 261120
        %v1000 = vsel %vm998, %v954, 0
        %v1003 = vsel %vm998, %v955, 0
        %v1006 = vsel %vm998, %v956, 0
        %v1009 = vsel %vm998, %v957, 0
        %v1012 = vsel %vm998, %v958, 0
        %v1015 = vsel %vm998, %v959, 0
        %v1018 = vsel %vm998, %v960, 0
        %v1021 = vsel %vm998, %v961, 0
        %v1024 = vsel %vm998, %v962, 0
        %v1027 = vsel %vm998, %v963, 0
        %v1030 = vsel %vm998, %v964, 0
        %v1033 = vsel %vm998, %v965, 0
        %v1036 = vsel %vm998, %v966, 0
        %v1039 = vsel %vm998, %v967, 0
        %v1042 = vsel %vm998, %v968, 0
        %v1045 = vsel %vm998, %v969, 0
        %v1048 = vsel %vm998, %v970, 0
        %v1051 = vsel %vm998, %v971, 0
        %v1054 = vsel %vm998, %v972, 0
        %v1057 = vsel %vm998, %v973, 0
        %v1060 = vsel %vm998, %v974, 0
        %v1063 = vsel %vm998, %v975, 0
        %v1066 = vsel %vm998, %v976, 0
        %v1069 = vsel %vm998, %v977, 0
        %1071 = vmatprep.subr.bf16.mxu0 0
        %1072 = vmatpush1.bf16.msra.mxu0 0
        %1073 = vmatprep.subr.bf16.mxu0 0
        %1074 = vmatpush1.bf16.msra.mxu0 0
        %1075 = vmatprep.subr.bf16.mxu0 0
        %1076 = vmatpush1.bf16.msra.mxu0 0
        %1077 = vmatprep.subr.bf16.mxu0 0
        %1078 = vmatpush1.bf16.msra.mxu0 0
        %1079 = vmatprep.subr.bf16.mxu0 0
        %1080 = vmatpush1.bf16.msra.mxu0 0
        %1081 = vmatprep.subr.bf16.mxu0 0
        %1082 = vmatpush1.bf16.msra.mxu0 0
        %1083 = vmatprep.subr.bf16.mxu0 %v993
        %1084 = vmatpush1.bf16.msra.mxu0 %v992
        %1085 = vmatprep.subr.bf16.mxu0 %v991
        %1086 = vmatpush1.bf16.msra.mxu0 %v990
        %1087 = vmatprep.subr.bf16.mxu0 0
        %1088 = vmatpush2.bf16.msra.mxu0 0
        %1089 = vmatprep.subr.bf16.mxu0 0
        %1090 = vmatpush2.bf16.msra.mxu0 0
        %1091 = vmatprep.subr.bf16.mxu0 0
        %1092 = vmatpush2.bf16.msra.mxu0 0
        %1093 = vmatprep.subr.bf16.mxu0 0
        %1094 = vmatpush2.bf16.msra.mxu0 0
        %1095 = vmatprep.subr.bf16.mxu0 0
        %1096 = vmatpush2.bf16.msra.mxu0 0
        %1097 = vmatprep.subr.bf16.mxu0 0
        %1098 = vmatpush2.bf16.msra.mxu0 0
        %1099 = vmatprep.subr.bf16.mxu0 0
        %1100 = vmatpush2.bf16.msra.mxu0 0
        %1101 = vmatprep.subr.bf16.mxu0 0
        %1102 = vmatpush2.bf16.msra.mxu0 0
        %1103 = vmatprep.mubr.bf16.mxu0 0
        %1104 = vmatmul.mubr.bf16.gmra.mxu0 %v1000
        %v1105 = vpop.f32.mrf.mxu0
        %v1106 = vadd.f32 0.0, %v1105
        %v1107 = vpop.f32.mrf.mxu0
        %v1108 = vadd.f32 0.0, %v1107
        %v1109 = vpop.f32.mrf.mxu0
        %v1110 = vadd.f32 0.0, %v1109
        %v1111 = vpop.f32.mrf.mxu0
        %v1112 = vadd.f32 0.0, %v1111
        %1113 = vmatprep.mubr.bf16.mxu0 0
        %1114 = vmatmul.mubr.bf16.gmra.mxu0 %v1003
        %v1115 = vpop.f32.mrf.mxu0
        %v1116 = vadd.f32 0.0, %v1115
        %v1117 = vpop.f32.mrf.mxu0
        %v1118 = vadd.f32 0.0, %v1117
        %v1119 = vpop.f32.mrf.mxu0
        %v1120 = vadd.f32 0.0, %v1119
        %v1121 = vpop.f32.mrf.mxu0
        %v1122 = vadd.f32 0.0, %v1121
        %1123 = vmatprep.mubr.bf16.mxu0 0
        %1124 = vmatmul.mubr.bf16.gmra.mxu0 %v1006
        %v1125 = vpop.f32.mrf.mxu0
        %v1126 = vadd.f32 0.0, %v1125
        %v1127 = vpop.f32.mrf.mxu0
        %v1128 = vadd.f32 0.0, %v1127
        %v1129 = vpop.f32.mrf.mxu0
        %v1130 = vadd.f32 0.0, %v1129
        %v1131 = vpop.f32.mrf.mxu0
        %v1132 = vadd.f32 0.0, %v1131
        %1133 = vmatprep.mubr.bf16.mxu0 0
        %1134 = vmatmul.mubr.bf16.gmra.mxu0 %v1009
        %v1135 = vpop.f32.mrf.mxu0
        %v1136 = vadd.f32 0.0, %v1135
        %v1137 = vpop.f32.mrf.mxu0
        %v1138 = vadd.f32 0.0, %v1137
        %v1139 = vpop.f32.mrf.mxu0
        %v1140 = vadd.f32 0.0, %v1139
        %v1141 = vpop.f32.mrf.mxu0
        %v1142 = vadd.f32 0.0, %v1141
        %1143 = vmatprep.mubr.bf16.mxu0 0
        %1144 = vmatmul.mubr.bf16.gmra.mxu0 %v1012
        %v1145 = vpop.f32.mrf.mxu0
        %v1146 = vadd.f32 0.0, %v1145
        %v1147 = vpop.f32.mrf.mxu0
        %v1148 = vadd.f32 0.0, %v1147
        %v1149 = vpop.f32.mrf.mxu0
        %v1150 = vadd.f32 0.0, %v1149
        %v1151 = vpop.f32.mrf.mxu0
        %v1152 = vadd.f32 0.0, %v1151
        %1153 = vmatprep.mubr.bf16.mxu0 0
        %1154 = vmatmul.mubr.bf16.gmra.mxu0 %v1015
        %v1155 = vpop.f32.mrf.mxu0
        %v1156 = vadd.f32 0.0, %v1155
        %v1157 = vpop.f32.mrf.mxu0
        %v1158 = vadd.f32 0.0, %v1157
        %v1159 = vpop.f32.mrf.mxu0
        %v1160 = vadd.f32 0.0, %v1159
        %v1161 = vpop.f32.mrf.mxu0
        %v1162 = vadd.f32 0.0, %v1161
        %1163 = vmatprep.mubr.bf16.mxu0 0
        %1164 = vmatmul.mubr.bf16.gmra.mxu0 %v1018
        %v1165 = vpop.f32.mrf.mxu0
        %v1166 = vadd.f32 0.0, %v1165
        %v1167 = vpop.f32.mrf.mxu0
        %v1168 = vadd.f32 0.0, %v1167
        %v1169 = vpop.f32.mrf.mxu0
        %v1170 = vadd.f32 0.0, %v1169
        %v1171 = vpop.f32.mrf.mxu0
        %v1172 = vadd.f32 0.0, %v1171
        %1173 = vmatprep.mubr.bf16.mxu0 0
        %1174 = vmatmul.mubr.bf16.gmra.mxu0 %v1021
        %v1175 = vpop.f32.mrf.mxu0
        %v1176 = vadd.f32 0.0, %v1175
        %v1177 = vpop.f32.mrf.mxu0
        %v1178 = vadd.f32 0.0, %v1177
        %v1179 = vpop.f32.mrf.mxu0
        %v1180 = vadd.f32 0.0, %v1179
        %v1181 = vpop.f32.mrf.mxu0
        %v1182 = vadd.f32 0.0, %v1181
        %1183 = vmatprep.mubr.bf16.mxu0 0
        %1184 = vmatmul.mubr.bf16.gmra.mxu0 %v1024
        %v1185 = vpop.f32.mrf.mxu0
        %v1186 = vadd.f32 0.0, %v1185
        %v1187 = vpop.f32.mrf.mxu0
        %v1188 = vadd.f32 0.0, %v1187
        %v1189 = vpop.f32.mrf.mxu0
        %v1190 = vadd.f32 0.0, %v1189
        %v1191 = vpop.f32.mrf.mxu0
        %v1192 = vadd.f32 0.0, %v1191
        %1193 = vmatprep.mubr.bf16.mxu0 0
        %1194 = vmatmul.mubr.bf16.gmra.mxu0 %v1027
        %v1195 = vpop.f32.mrf.mxu0
        %v1196 = vadd.f32 0.0, %v1195
        %v1197 = vpop.f32.mrf.mxu0
        %v1198 = vadd.f32 0.0, %v1197
        %v1199 = vpop.f32.mrf.mxu0
        %v1200 = vadd.f32 0.0, %v1199
        %v1201 = vpop.f32.mrf.mxu0
        %v1202 = vadd.f32 0.0, %v1201
        %1203 = vmatprep.mubr.bf16.mxu0 0
        %1204 = vmatmul.mubr.bf16.gmra.mxu0 %v1030
        %v1205 = vpop.f32.mrf.mxu0
        %v1206 = vadd.f32 0.0, %v1205
        %v1207 = vpop.f32.mrf.mxu0
        %v1208 = vadd.f32 0.0, %v1207
        %v1209 = vpop.f32.mrf.mxu0
        %v1210 = vadd.f32 0.0, %v1209
        %v1211 = vpop.f32.mrf.mxu0
        %v1212 = vadd.f32 0.0, %v1211
        %1213 = vmatprep.mubr.bf16.mxu0 0
        %1214 = vmatmul.mubr.bf16.gmra.mxu0 %v1033
        %v1215 = vpop.f32.mrf.mxu0
        %v1216 = vadd.f32 0.0, %v1215
        %v1217 = vpop.f32.mrf.mxu0
        %v1218 = vadd.f32 0.0, %v1217
        %v1219 = vpop.f32.mrf.mxu0
        %v1220 = vadd.f32 0.0, %v1219
        %v1221 = vpop.f32.mrf.mxu0
        %v1222 = vadd.f32 0.0, %v1221
        %1223 = vmatprep.mubr.bf16.mxu0 0
        %1224 = vmatmul.mubr.bf16.gmra.mxu0 %v1036
        %v1225 = vpop.f32.mrf.mxu0
        %v1226 = vadd.f32 0.0, %v1225
        %v1227 = vpop.f32.mrf.mxu0
        %v1228 = vadd.f32 0.0, %v1227
        %v1229 = vpop.f32.mrf.mxu0
        %v1230 = vadd.f32 0.0, %v1229
        %v1231 = vpop.f32.mrf.mxu0
        %v1232 = vadd.f32 0.0, %v1231
        %1233 = vmatprep.mubr.bf16.mxu0 0
        %1234 = vmatmul.mubr.bf16.gmra.mxu0 %v1039
        %v1235 = vpop.f32.mrf.mxu0
        %v1236 = vadd.f32 0.0, %v1235
        %v1237 = vpop.f32.mrf.mxu0
        %v1238 = vadd.f32 0.0, %v1237
        %v1239 = vpop.f32.mrf.mxu0
        %v1240 = vadd.f32 0.0, %v1239
        %v1241 = vpop.f32.mrf.mxu0
        %v1242 = vadd.f32 0.0, %v1241
        %1243 = vmatprep.mubr.bf16.mxu0 0
        %1244 = vmatmul.mubr.bf16.gmra.mxu0 %v1042
        %v1245 = vpop.f32.mrf.mxu0
        %v1246 = vadd.f32 0.0, %v1245
        %v1247 = vpop.f32.mrf.mxu0
        %v1248 = vadd.f32 0.0, %v1247
        %v1249 = vpop.f32.mrf.mxu0
        %v1250 = vadd.f32 0.0, %v1249
        %v1251 = vpop.f32.mrf.mxu0
        %v1252 = vadd.f32 0.0, %v1251
        %1253 = vmatprep.mubr.bf16.mxu0 0
        %1254 = vmatmul.mubr.bf16.gmra.mxu0 %v1045
        %v1255 = vpop.f32.mrf.mxu0
        %v1256 = vadd.f32 0.0, %v1255
        %v1257 = vpop.f32.mrf.mxu0
        %v1258 = vadd.f32 0.0, %v1257
        %v1259 = vpop.f32.mrf.mxu0
        %v1260 = vadd.f32 0.0, %v1259
        %v1261 = vpop.f32.mrf.mxu0
        %v1262 = vadd.f32 0.0, %v1261
        %1263 = vmatprep.mubr.bf16.mxu0 0
        %1264 = vmatmul.mubr.bf16.gmra.mxu0 %v1048
        %v1265 = vpop.f32.mrf.mxu0
        %v1266 = vadd.f32 0.0, %v1265
        %v1267 = vpop.f32.mrf.mxu0
        %v1268 = vadd.f32 0.0, %v1267
        %v1269 = vpop.f32.mrf.mxu0
        %v1270 = vadd.f32 0.0, %v1269
        %v1271 = vpop.f32.mrf.mxu0
        %v1272 = vadd.f32 0.0, %v1271
        %1273 = vmatprep.mubr.bf16.mxu0 0
        %1274 = vmatmul.mubr.bf16.gmra.mxu0 %v1051
        %v1275 = vpop.f32.mrf.mxu0
        %v1276 = vadd.f32 0.0, %v1275
        %v1277 = vpop.f32.mrf.mxu0
        %v1278 = vadd.f32 0.0, %v1277
        %v1279 = vpop.f32.mrf.mxu0
        %v1280 = vadd.f32 0.0, %v1279
        %v1281 = vpop.f32.mrf.mxu0
        %v1282 = vadd.f32 0.0, %v1281
        %1283 = vmatprep.mubr.bf16.mxu0 0
        %1284 = vmatmul.mubr.bf16.gmra.mxu0 %v1054
        %v1285 = vpop.f32.mrf.mxu0
        %v1286 = vadd.f32 0.0, %v1285
        %v1287 = vpop.f32.mrf.mxu0
        %v1288 = vadd.f32 0.0, %v1287
        %v1289 = vpop.f32.mrf.mxu0
        %v1290 = vadd.f32 0.0, %v1289
        %v1291 = vpop.f32.mrf.mxu0
        %v1292 = vadd.f32 0.0, %v1291
        %1293 = vmatprep.mubr.bf16.mxu0 0
        %1294 = vmatmul.mubr.bf16.gmra.mxu0 %v1057
        %v1295 = vpop.f32.mrf.mxu0
        %v1296 = vadd.f32 0.0, %v1295
        %v1297 = vpop.f32.mrf.mxu0
        %v1298 = vadd.f32 0.0, %v1297
        %v1299 = vpop.f32.mrf.mxu0
        %v1300 = vadd.f32 0.0, %v1299
        %v1301 = vpop.f32.mrf.mxu0
        %v1302 = vadd.f32 0.0, %v1301
        %1303 = vmatprep.mubr.bf16.mxu0 0
        %1304 = vmatmul.mubr.bf16.gmra.mxu0 %v1060
        %v1305 = vpop.f32.mrf.mxu0
        %v1306 = vadd.f32 0.0, %v1305
        %v1307 = vpop.f32.mrf.mxu0
        %v1308 = vadd.f32 0.0, %v1307
        %v1309 = vpop.f32.mrf.mxu0
        %v1310 = vadd.f32 0.0, %v1309
        %v1311 = vpop.f32.mrf.mxu0
        %v1312 = vadd.f32 0.0, %v1311
        %1313 = vmatprep.mubr.bf16.mxu0 0
        %1314 = vmatmul.mubr.bf16.gmra.mxu0 %v1063
        %v1315 = vpop.f32.mrf.mxu0
        %v1316 = vadd.f32 0.0, %v1315
        %v1317 = vpop.f32.mrf.mxu0
        %v1318 = vadd.f32 0.0, %v1317
        %v1319 = vpop.f32.mrf.mxu0
        %v1320 = vadd.f32 0.0, %v1319
        %v1321 = vpop.f32.mrf.mxu0
        %v1322 = vadd.f32 0.0, %v1321
        %1323 = vmatprep.mubr.bf16.mxu0 0
        %1324 = vmatmul.mubr.bf16.gmra.mxu0 %v1066
        %v1325 = vpop.f32.mrf.mxu0
        %v1326 = vadd.f32 0.0, %v1325
        %v1327 = vpop.f32.mrf.mxu0
        %v1328 = vadd.f32 0.0, %v1327
        %v1329 = vpop.f32.mrf.mxu0
        %v1330 = vadd.f32 0.0, %v1329
        %v1331 = vpop.f32.mrf.mxu0
        %v1332 = vadd.f32 0.0, %v1331
        %1333 = vmatprep.mubr.bf16.mxu0 0
        %1334 = vmatmul.mubr.bf16.gmra.mxu0 %v1069
        %v1335 = vpop.f32.mrf.mxu0
        %v1336 = vadd.f32 0.0, %v1335
        %v1337 = vpop.f32.mrf.mxu0
        %v1338 = vadd.f32 0.0, %v1337
        %v1339 = vpop.f32.mrf.mxu0
        %v1340 = vadd.f32 0.0, %v1339
        %v1341 = vpop.f32.mrf.mxu0
        %v1342 = vadd.f32 0.0, %v1341
        %1343 = vdwg.mxu0
        %v1344 = vmax.f32 %v1106, %v1110
        %v1345 = vmax.f32 %v1344, %v1116
        %v1346 = vmax.f32 %v1345, %v1120
        %v1347 = vrot.slane %v1346, 4
        %v1348 = vmax.f32 %v1346, %v1347
        %v1349 = vrot.slane %v1348, 2
        %v1350 = vmax.f32 %v1348, %v1349
        %v1351 = vrot.slane %v1350, 1
        %v1352 = vmax.f32 %v1350, %v1351
        %v1353 = vmax.f32 %v1108, %v1112
        %v1354 = vmax.f32 %v1353, %v1118
        %v1355 = vmax.f32 %v1354, %v1122
        %v1356 = vrot.slane %v1355, 4
        %v1357 = vmax.f32 %v1355, %v1356
        %v1358 = vrot.slane %v1357, 2
        %v1359 = vmax.f32 %v1357, %v1358
        %v1360 = vrot.slane %v1359, 1
        %v1361 = vmax.f32 %v1359, %v1360
        %v1362 = vmax.f32 %v1126, %v1130
        %v1363 = vmax.f32 %v1362, %v1136
        %v1364 = vmax.f32 %v1363, %v1140
        %v1365 = vrot.slane %v1364, 4
        %v1366 = vmax.f32 %v1364, %v1365
        %v1367 = vrot.slane %v1366, 2
        %v1368 = vmax.f32 %v1366, %v1367
        %v1369 = vrot.slane %v1368, 1
        %v1370 = vmax.f32 %v1368, %v1369
        %v1371 = vmax.f32 %v1128, %v1132
        %v1372 = vmax.f32 %v1371, %v1138
        %v1373 = vmax.f32 %v1372, %v1142
        %v1374 = vrot.slane %v1373, 4
        %v1375 = vmax.f32 %v1373, %v1374
        %v1376 = vrot.slane %v1375, 2
        %v1377 = vmax.f32 %v1375, %v1376
        %v1378 = vrot.slane %v1377, 1
        %v1379 = vmax.f32 %v1377, %v1378
        %v1380 = vmax.f32 %v1146, %v1150
        %v1381 = vmax.f32 %v1380, %v1156
        %v1382 = vmax.f32 %v1381, %v1160
        %v1383 = vrot.slane %v1382, 4
        %v1384 = vmax.f32 %v1382, %v1383
        %v1385 = vrot.slane %v1384, 2
        %v1386 = vmax.f32 %v1384, %v1385
        %v1387 = vrot.slane %v1386, 1
        %v1388 = vmax.f32 %v1386, %v1387
        %v1389 = vmax.f32 %v1148, %v1152
        %v1390 = vmax.f32 %v1389, %v1158
        %v1391 = vmax.f32 %v1390, %v1162
        %v1392 = vrot.slane %v1391, 4
        %v1393 = vmax.f32 %v1391, %v1392
        %v1394 = vrot.slane %v1393, 2
        %v1395 = vmax.f32 %v1393, %v1394
        %v1396 = vrot.slane %v1395, 1
        %v1397 = vmax.f32 %v1395, %v1396
        %v1398 = vmax.f32 %v1166, %v1170
        %v1399 = vmax.f32 %v1398, %v1176
        %v1400 = vmax.f32 %v1399, %v1180
        %v1401 = vrot.slane %v1400, 4
        %v1402 = vmax.f32 %v1400, %v1401
        %v1403 = vrot.slane %v1402, 2
        %v1404 = vmax.f32 %v1402, %v1403
        %v1405 = vrot.slane %v1404, 1
        %v1406 = vmax.f32 %v1404, %v1405
        %v1407 = vmax.f32 %v1168, %v1172
        %v1408 = vmax.f32 %v1407, %v1178
        %v1409 = vmax.f32 %v1408, %v1182
        %v1410 = vrot.slane %v1409, 4
        %v1411 = vmax.f32 %v1409, %v1410
        %v1412 = vrot.slane %v1411, 2
        %v1413 = vmax.f32 %v1411, %v1412
        %v1414 = vrot.slane %v1413, 1
        %v1415 = vmax.f32 %v1413, %v1414
        %v1416 = vsub.f32 %v1106, %v1352
        %v1417 = vsub.f32 %v1108, %v1361
        %v1418 = vsub.f32 %v1110, %v1352
        %v1419 = vsub.f32 %v1112, %v1361
        %v1420 = vsub.f32 %v1116, %v1352
        %v1421 = vsub.f32 %v1118, %v1361
        %v1422 = vsub.f32 %v1120, %v1352
        %v1423 = vsub.f32 %v1122, %v1361
        %v1424 = vsub.f32 %v1126, %v1370
        %v1425 = vsub.f32 %v1128, %v1379
        %v1426 = vsub.f32 %v1130, %v1370
        %v1427 = vsub.f32 %v1132, %v1379
        %v1428 = vsub.f32 %v1136, %v1370
        %v1429 = vsub.f32 %v1138, %v1379
        %v1430 = vsub.f32 %v1140, %v1370
        %v1431 = vsub.f32 %v1142, %v1379
        %v1432 = vsub.f32 %v1146, %v1388
        %v1433 = vsub.f32 %v1148, %v1397
        %v1434 = vsub.f32 %v1150, %v1388
        %v1435 = vsub.f32 %v1152, %v1397
        %v1436 = vsub.f32 %v1156, %v1388
        %v1437 = vsub.f32 %v1158, %v1397
        %v1438 = vsub.f32 %v1160, %v1388
        %v1439 = vsub.f32 %v1162, %v1397
        %v1440 = vsub.f32 %v1166, %v1406
        %v1441 = vsub.f32 %v1168, %v1415
        %v1442 = vsub.f32 %v1170, %v1406
        %v1443 = vsub.f32 %v1172, %v1415
        %v1444 = vsub.f32 %v1176, %v1406
        %v1445 = vsub.f32 %v1178, %v1415
        %v1446 = vsub.f32 %v1180, %v1406
        %v1447 = vsub.f32 %v1182, %v1415
        %v1448 = vmul.f32 %v1416, 1.442695
        %v1449 = vpow.pop %v1448
        %v1450 = vmul.f32 %v1417, 1.442695
        %v1451 = vpow.pop %v1450
        %v1452 = vmul.f32 %v1418, 1.442695
        %v1453 = vpow.pop %v1452
        %v1454 = vmul.f32 %v1419, 1.442695
        %v1455 = vpow.pop %v1454
        %v1456 = vmul.f32 %v1420, 1.442695
        %v1457 = vpow.pop %v1456
        %v1458 = vmul.f32 %v1421, 1.442695
        %v1459 = vpow.pop %v1458
        %v1460 = vmul.f32 %v1422, 1.442695
        %v1461 = vpow.pop %v1460
        %v1462 = vmul.f32 %v1423, 1.442695
        %v1463 = vpow.pop %v1462
        %v1464 = vmul.f32 %v1424, 1.442695
        %v1465 = vpow.pop %v1464
        %v1466 = vmul.f32 %v1425, 1.442695
        %v1467 = vpow.pop %v1466
        %v1468 = vmul.f32 %v1426, 1.442695
        %v1469 = vpow.pop %v1468
        %v1470 = vmul.f32 %v1427, 1.442695
        %v1471 = vpow.pop %v1470
        %v1472 = vmul.f32 %v1428, 1.442695
        %v1473 = vpow.pop %v1472
        %v1474 = vmul.f32 %v1429, 1.442695
        %v1475 = vpow.pop %v1474
        %v1476 = vmul.f32 %v1430, 1.442695
        %v1477 = vpow.pop %v1476
        %v1478 = vmul.f32 %v1431, 1.442695
        %v1479 = vpow.pop %v1478
        %v1480 = vmul.f32 %v1432, 1.442695
        %v1481 = vpow.pop %v1480
        %v1482 = vmul.f32 %v1433, 1.442695
        %v1483 = vpow.pop %v1482
        %v1484 = vmul.f32 %v1434, 1.442695
        %v1485 = vpow.pop %v1484
        %v1486 = vmul.f32 %v1435, 1.442695
        %v1487 = vpow.pop %v1486
        %v1488 = vmul.f32 %v1436, 1.442695
        %v1489 = vpow.pop %v1488
        %v1490 = vmul.f32 %v1437, 1.442695
        %v1491 = vpow.pop %v1490
        %v1492 = vmul.f32 %v1438, 1.442695
        %v1493 = vpow.pop %v1492
        %v1494 = vmul.f32 %v1439, 1.442695
        %v1495 = vpow.pop %v1494
        %v1496 = vmul.f32 %v1440, 1.442695
        %v1497 = vpow.pop %v1496
        %v1498 = vmul.f32 %v1441, 1.442695
        %v1499 = vpow.pop %v1498
        %v1500 = vmul.f32 %v1442, 1.442695
        %v1501 = vpow.pop %v1500
        %v1502 = vmul.f32 %v1443, 1.442695
        %v1503 = vpow.pop %v1502
        %v1504 = vmul.f32 %v1444, 1.442695
        %v1505 = vpow.pop %v1504
        %v1506 = vmul.f32 %v1445, 1.442695
        %v1507 = vpow.pop %v1506
        %v1508 = vmul.f32 %v1446, 1.442695
        %v1509 = vpow.pop %v1508
        %v1510 = vmul.f32 %v1447, 1.442695
        %v1511 = vpow.pop %v1510
        %v1512 = vadd.f32 %v1449, %v1453
        %v1513 = vadd.f32 %v1512, %v1457
        %v1514 = vadd.f32 %v1513, %v1461
        %v1515 = vrot.slane %v1514, 4
        %v1516 = vadd.f32 %v1514, %v1515
        %v1517 = vrot.slane %v1516, 2
        %v1518 = vadd.f32 %v1516, %v1517
        %v1519 = vrot.slane %v1518, 1
        %v1520 = vadd.f32 %v1518, %v1519
        %v1521 = vadd.f32 %v1451, %v1455
        %v1522 = vadd.f32 %v1521, %v1459
        %v1523 = vadd.f32 %v1522, %v1463
        %v1524 = vrot.slane %v1523, 4
        %v1525 = vadd.f32 %v1523, %v1524
        %v1526 = vrot.slane %v1525, 2
        %v1527 = vadd.f32 %v1525, %v1526
        %v1528 = vrot.slane %v1527, 1
        %v1529 = vadd.f32 %v1527, %v1528
        %v1530 = vadd.f32 %v1465, %v1469
        %v1531 = vadd.f32 %v1530, %v1473
        %v1532 = vadd.f32 %v1531, %v1477
        %v1533 = vrot.slane %v1532, 4
        %v1534 = vadd.f32 %v1532, %v1533
        %v1535 = vrot.slane %v1534, 2
        %v1536 = vadd.f32 %v1534, %v1535
        %v1537 = vrot.slane %v1536, 1
        %v1538 = vadd.f32 %v1536, %v1537
        %v1539 = vadd.f32 %v1467, %v1471
        %v1540 = vadd.f32 %v1539, %v1475
        %v1541 = vadd.f32 %v1540, %v1479
        %v1542 = vrot.slane %v1541, 4
        %v1543 = vadd.f32 %v1541, %v1542
        %v1544 = vrot.slane %v1543, 2
        %v1545 = vadd.f32 %v1543, %v1544
        %v1546 = vrot.slane %v1545, 1
        %v1547 = vadd.f32 %v1545, %v1546
        %v1548 = vadd.f32 %v1481, %v1485
        %v1549 = vadd.f32 %v1548, %v1489
        %v1550 = vadd.f32 %v1549, %v1493
        %v1551 = vrot.slane %v1550, 4
        %v1552 = vadd.f32 %v1550, %v1551
        %v1553 = vrot.slane %v1552, 2
        %v1554 = vadd.f32 %v1552, %v1553
        %v1555 = vrot.slane %v1554, 1
        %v1556 = vadd.f32 %v1554, %v1555
        %v1557 = vadd.f32 %v1483, %v1487
        %v1558 = vadd.f32 %v1557, %v1491
        %v1559 = vadd.f32 %v1558, %v1495
        %v1560 = vrot.slane %v1559, 4
        %v1561 = vadd.f32 %v1559, %v1560
        %v1562 = vrot.slane %v1561, 2
        %v1563 = vadd.f32 %v1561, %v1562
        %v1564 = vrot.slane %v1563, 1
        %v1565 = vadd.f32 %v1563, %v1564
        %v1566 = vadd.f32 %v1497, %v1501
        %v1567 = vadd.f32 %v1566, %v1505
        %v1568 = vadd.f32 %v1567, %v1509
        %v1569 = vrot.slane %v1568, 4
        %v1570 = vadd.f32 %v1568, %v1569
        %v1571 = vrot.slane %v1570, 2
        %v1572 = vadd.f32 %v1570, %v1571
        %v1573 = vrot.slane %v1572, 1
        %v1574 = vadd.f32 %v1572, %v1573
        %v1575 = vadd.f32 %v1499, %v1503
        %v1576 = vadd.f32 %v1575, %v1507
        %v1577 = vadd.f32 %v1576, %v1511
        %v1578 = vrot.slane %v1577, 4
        %v1579 = vadd.f32 %v1577, %v1578
        %v1580 = vrot.slane %v1579, 2
        %v1581 = vadd.f32 %v1579, %v1580
        %v1582 = vrot.slane %v1581, 1
        %v1583 = vadd.f32 %v1581, %v1582
        %v1584 = vrcp.pop %v1520
        %v1585 = vrcp.pop %v1529
        %v1586 = vrcp.pop %v1538
        %v1587 = vrcp.pop %v1547
        %v1588 = vrcp.pop %v1556
        %v1589 = vrcp.pop %v1565
        %v1590 = vrcp.pop %v1574
        %v1591 = vrcp.pop %v1583
        %v1592 = vmul.f32 %v1584, 0.17677669
        %v1593 = vmul.f32 %v1585, 0.17677669
        %v1594 = vmul.f32 %v1586, 0.17677669
        %v1595 = vmul.f32 %v1587, 0.17677669
        %v1596 = vmul.f32 %v1588, 0.17677669
        %v1597 = vmul.f32 %v1589, 0.17677669
        %v1598 = vmul.f32 %v1590, 0.17677669
        %v1599 = vmul.f32 %v1591, 0.17677669
        %v1600 = vmul.f32 %v1449, %v1592
        %v1601 = vmul.f32 %v1451, %v1593
        %v1602 = vmul.f32 %v1453, %v1592
        %v1603 = vmul.f32 %v1455, %v1593
        %v1604 = vmul.f32 %v1457, %v1592
        %v1605 = vmul.f32 %v1459, %v1593
        %v1606 = vmul.f32 %v1461, %v1592
        %v1607 = vmul.f32 %v1463, %v1593
        %v1608 = vmul.f32 %v1465, %v1594
        %v1609 = vmul.f32 %v1467, %v1595
        %v1610 = vmul.f32 %v1469, %v1594
        %v1611 = vmul.f32 %v1471, %v1595
        %v1612 = vmul.f32 %v1473, %v1594
        %v1613 = vmul.f32 %v1475, %v1595
        %v1614 = vmul.f32 %v1477, %v1594
        %v1615 = vmul.f32 %v1479, %v1595
        %v1616 = vmul.f32 %v1481, %v1596
        %v1617 = vmul.f32 %v1483, %v1597
        %v1618 = vmul.f32 %v1485, %v1596
        %v1619 = vmul.f32 %v1487, %v1597
        %v1620 = vmul.f32 %v1489, %v1596
        %v1621 = vmul.f32 %v1491, %v1597
        %v1622 = vmul.f32 %v1493, %v1596
        %v1623 = vmul.f32 %v1495, %v1597
        %v1624 = vmul.f32 %v1497, %v1598
        %v1625 = vmul.f32 %v1499, %v1599
        %v1626 = vmul.f32 %v1501, %v1598
        %v1627 = vmul.f32 %v1503, %v1599
        %v1628 = vmul.f32 %v1505, %v1598
        %v1629 = vmul.f32 %v1507, %v1599
        %v1630 = vmul.f32 %v1509, %v1598
        %v1631 = vmul.f32 %v1511, %v1599
        %v1632 = vmax.f32 %v1186, %v1188
        %1633 = vmax.xlane.f32.xlu0 %v1632
        %v1634 = vpop.xlane.xlu0 %1633
        %v1635 = vmax.f32 %v1190, %v1192
        %1636 = vmax.xlane.f32.xlu0 %v1635
        %v1637 = vpop.xlane.xlu0 %1636
        %v1638 = vmax.f32 %v1196, %v1198
        %1639 = vmax.xlane.f32.xlu0 %v1638
        %v1640 = vpop.xlane.xlu0 %1639
        %v1641 = vmax.f32 %v1200, %v1202
        %1642 = vmax.xlane.f32.xlu0 %v1641
        %v1643 = vpop.xlane.xlu0 %1642
        %v1644 = vmax.f32 %v1206, %v1208
        %1645 = vmax.xlane.f32.xlu0 %v1644
        %v1646 = vpop.xlane.xlu0 %1645
        %v1647 = vmax.f32 %v1210, %v1212
        %1648 = vmax.xlane.f32.xlu0 %v1647
        %v1649 = vpop.xlane.xlu0 %1648
        %v1650 = vmax.f32 %v1216, %v1218
        %1651 = vmax.xlane.f32.xlu0 %v1650
        %v1652 = vpop.xlane.xlu0 %1651
        %v1653 = vmax.f32 %v1220, %v1222
        %1654 = vmax.xlane.f32.xlu0 %v1653
        %v1655 = vpop.xlane.xlu0 %1654
        %v1656 = vmax.f32 %v1226, %v1228
        %1657 = vmax.xlane.f32.xlu0 %v1656
        %v1658 = vpop.xlane.xlu0 %1657
        %v1659 = vmax.f32 %v1230, %v1232
        %1660 = vmax.xlane.f32.xlu0 %v1659
        %v1661 = vpop.xlane.xlu0 %1660
        %v1662 = vmax.f32 %v1236, %v1238
        %1663 = vmax.xlane.f32.xlu0 %v1662
        %v1664 = vpop.xlane.xlu0 %1663
        %v1665 = vmax.f32 %v1240, %v1242
        %1666 = vmax.xlane.f32.xlu0 %v1665
        %v1667 = vpop.xlane.xlu0 %1666
        %v1668 = vmax.f32 %v1246, %v1248
        %1669 = vmax.xlane.f32.xlu0 %v1668
        %v1670 = vpop.xlane.xlu0 %1669
        %v1671 = vmax.f32 %v1250, %v1252
        %1672 = vmax.xlane.f32.xlu0 %v1671
        %v1673 = vpop.xlane.xlu0 %1672
        %v1674 = vmax.f32 %v1256, %v1258
        %1675 = vmax.xlane.f32.xlu0 %v1674
        %v1676 = vpop.xlane.xlu0 %1675
        %v1677 = vmax.f32 %v1260, %v1262
        %1678 = vmax.xlane.f32.xlu0 %v1677
        %v1679 = vpop.xlane.xlu0 %1678
        %v1680 = vsub.f32 %v1186, %v1634
        %v1681 = vsub.f32 %v1188, %v1634
        %v1682 = vsub.f32 %v1190, %v1637
        %v1683 = vsub.f32 %v1192, %v1637
        %v1684 = vsub.f32 %v1196, %v1640
        %v1685 = vsub.f32 %v1198, %v1640
        %v1686 = vsub.f32 %v1200, %v1643
        %v1687 = vsub.f32 %v1202, %v1643
        %v1688 = vsub.f32 %v1206, %v1646
        %v1689 = vsub.f32 %v1208, %v1646
        %v1690 = vsub.f32 %v1210, %v1649
        %v1691 = vsub.f32 %v1212, %v1649
        %v1692 = vsub.f32 %v1216, %v1652
        %v1693 = vsub.f32 %v1218, %v1652
        %v1694 = vsub.f32 %v1220, %v1655
        %v1695 = vsub.f32 %v1222, %v1655
        %v1696 = vsub.f32 %v1226, %v1658
        %v1697 = vsub.f32 %v1228, %v1658
        %v1698 = vsub.f32 %v1230, %v1661
        %v1699 = vsub.f32 %v1232, %v1661
        %v1700 = vsub.f32 %v1236, %v1664
        %v1701 = vsub.f32 %v1238, %v1664
        %v1702 = vsub.f32 %v1240, %v1667
        %v1703 = vsub.f32 %v1242, %v1667
        %v1704 = vsub.f32 %v1246, %v1670
        %v1705 = vsub.f32 %v1248, %v1670
        %v1706 = vsub.f32 %v1250, %v1673
        %v1707 = vsub.f32 %v1252, %v1673
        %v1708 = vsub.f32 %v1256, %v1676
        %v1709 = vsub.f32 %v1258, %v1676
        %v1710 = vsub.f32 %v1260, %v1679
        %v1711 = vsub.f32 %v1262, %v1679
        %v1712 = vmul.f32 %v1680, 1.442695
        %v1713 = vpow.pop %v1712
        %v1714 = vmul.f32 %v1681, 1.442695
        %v1715 = vpow.pop %v1714
        %v1716 = vmul.f32 %v1682, 1.442695
        %v1717 = vpow.pop %v1716
        %v1718 = vmul.f32 %v1683, 1.442695
        %v1719 = vpow.pop %v1718
        %v1720 = vmul.f32 %v1684, 1.442695
        %v1721 = vpow.pop %v1720
        %v1722 = vmul.f32 %v1685, 1.442695
        %v1723 = vpow.pop %v1722
        %v1724 = vmul.f32 %v1686, 1.442695
        %v1725 = vpow.pop %v1724
        %v1726 = vmul.f32 %v1687, 1.442695
        %v1727 = vpow.pop %v1726
        %v1728 = vmul.f32 %v1688, 1.442695
        %v1729 = vpow.pop %v1728
        %v1730 = vmul.f32 %v1689, 1.442695
        %v1731 = vpow.pop %v1730
        %v1732 = vmul.f32 %v1690, 1.442695
        %v1733 = vpow.pop %v1732
        %v1734 = vmul.f32 %v1691, 1.442695
        %v1735 = vpow.pop %v1734
        %v1736 = vmul.f32 %v1692, 1.442695
        %v1737 = vpow.pop %v1736
        %v1738 = vmul.f32 %v1693, 1.442695
        %v1739 = vpow.pop %v1738
        %v1740 = vmul.f32 %v1694, 1.442695
        %v1741 = vpow.pop %v1740
        %v1742 = vmul.f32 %v1695, 1.442695
        %v1743 = vpow.pop %v1742
        %v1744 = vmul.f32 %v1696, 1.442695
        %v1745 = vpow.pop %v1744
        %v1746 = vmul.f32 %v1697, 1.442695
        %v1747 = vpow.pop %v1746
        %v1748 = vmul.f32 %v1698, 1.442695
        %v1749 = vpow.pop %v1748
        %v1750 = vmul.f32 %v1699, 1.442695
        %v1751 = vpow.pop %v1750
        %v1752 = vmul.f32 %v1700, 1.442695
        %v1753 = vpow.pop %v1752
        %v1754 = vmul.f32 %v1701, 1.442695
        %v1755 = vpow.pop %v1754
        %v1756 = vmul.f32 %v1702, 1.442695
        %v1757 = vpow.pop %v1756
        %v1758 = vmul.f32 %v1703, 1.442695
        %v1759 = vpow.pop %v1758
        %v1760 = vmul.f32 %v1704, 1.442695
        %v1761 = vpow.pop %v1760
        %v1762 = vmul.f32 %v1705, 1.442695
        %v1763 = vpow.pop %v1762
        %v1764 = vmul.f32 %v1706, 1.442695
        %v1765 = vpow.pop %v1764
        %v1766 = vmul.f32 %v1707, 1.442695
        %v1767 = vpow.pop %v1766
        %v1768 = vmul.f32 %v1708, 1.442695
        %v1769 = vpow.pop %v1768
        %v1770 = vmul.f32 %v1709, 1.442695
        %v1771 = vpow.pop %v1770
        %v1772 = vmul.f32 %v1710, 1.442695
        %v1773 = vpow.pop %v1772
        %v1774 = vmul.f32 %v1711, 1.442695
        %v1775 = vpow.pop %v1774
        %v1776 = vadd.f32 %v1713, %v1715
        %1777 = vadd.xlane.f32.xlu0 %v1776
        %v1778 = vpop.xlane.xlu0 %1777
        %v1779 = vadd.f32 %v1717, %v1719
        %1780 = vadd.xlane.f32.xlu0 %v1779
        %v1781 = vpop.xlane.xlu0 %1780
        %v1782 = vadd.f32 %v1721, %v1723
        %1783 = vadd.xlane.f32.xlu0 %v1782
        %v1784 = vpop.xlane.xlu0 %1783
        %v1785 = vadd.f32 %v1725, %v1727
        %1786 = vadd.xlane.f32.xlu0 %v1785
        %v1787 = vpop.xlane.xlu0 %1786
        %v1788 = vadd.f32 %v1729, %v1731
        %1789 = vadd.xlane.f32.xlu0 %v1788
        %v1790 = vpop.xlane.xlu0 %1789
        %v1791 = vadd.f32 %v1733, %v1735
        %1792 = vadd.xlane.f32.xlu0 %v1791
        %v1793 = vpop.xlane.xlu0 %1792
        %v1794 = vadd.f32 %v1737, %v1739
        %1795 = vadd.xlane.f32.xlu0 %v1794
        %v1796 = vpop.xlane.xlu0 %1795
        %v1797 = vadd.f32 %v1741, %v1743
        %1798 = vadd.xlane.f32.xlu0 %v1797
        %v1799 = vpop.xlane.xlu0 %1798
        %v1800 = vadd.f32 %v1745, %v1747
        %1801 = vadd.xlane.f32.xlu0 %v1800
        %v1802 = vpop.xlane.xlu0 %1801
        %v1803 = vadd.f32 %v1749, %v1751
        %1804 = vadd.xlane.f32.xlu0 %v1803
        %v1805 = vpop.xlane.xlu0 %1804
        %v1806 = vadd.f32 %v1753, %v1755
        %1807 = vadd.xlane.f32.xlu0 %v1806
        %v1808 = vpop.xlane.xlu0 %1807
        %v1809 = vadd.f32 %v1757, %v1759
        %1810 = vadd.xlane.f32.xlu0 %v1809
        %v1811 = vpop.xlane.xlu0 %1810
        %v1812 = vadd.f32 %v1761, %v1763
        %1813 = vadd.xlane.f32.xlu0 %v1812
        %v1814 = vpop.xlane.xlu0 %1813
        %v1815 = vadd.f32 %v1765, %v1767
        %1816 = vadd.xlane.f32.xlu0 %v1815
        %v1817 = vpop.xlane.xlu0 %1816
        %v1818 = vadd.f32 %v1769, %v1771
        %1819 = vadd.xlane.f32.xlu0 %v1818
        %v1820 = vpop.xlane.xlu0 %1819
        %v1821 = vadd.f32 %v1773, %v1775
        %1822 = vadd.xlane.f32.xlu0 %v1821
        %v1823 = vpop.xlane.xlu0 %1822
        %v1824 = vrcp.pop %v1778
        %v1825 = vrcp.pop %v1781
        %v1826 = vrcp.pop %v1784
        %v1827 = vrcp.pop %v1787
        %v1828 = vrcp.pop %v1790
        %v1829 = vrcp.pop %v1793
        %v1830 = vrcp.pop %v1796
        %v1831 = vrcp.pop %v1799
        %v1832 = vrcp.pop %v1802
        %v1833 = vrcp.pop %v1805
        %v1834 = vrcp.pop %v1808
        %v1835 = vrcp.pop %v1811
        %v1836 = vrcp.pop %v1814
        %v1837 = vrcp.pop %v1817
        %v1838 = vrcp.pop %v1820
        %v1839 = vrcp.pop %v1823
        %v1840 = vmul.f32 %v1713, %v1824
        %v1841 = vmul.f32 %v1715, %v1824
        %v1842 = vmul.f32 %v1717, %v1825
        %v1843 = vmul.f32 %v1719, %v1825
        %v1844 = vmul.f32 %v1721, %v1826
        %v1845 = vmul.f32 %v1723, %v1826
        %v1846 = vmul.f32 %v1725, %v1827
        %v1847 = vmul.f32 %v1727, %v1827
        %v1848 = vmul.f32 %v1729, %v1828
        %v1849 = vmul.f32 %v1731, %v1828
        %v1850 = vmul.f32 %v1733, %v1829
        %v1851 = vmul.f32 %v1735, %v1829
        %v1852 = vmul.f32 %v1737, %v1830
        %v1853 = vmul.f32 %v1739, %v1830
        %v1854 = vmul.f32 %v1741, %v1831
        %v1855 = vmul.f32 %v1743, %v1831
        %v1856 = vmul.f32 %v1745, %v1832
        %v1857 = vmul.f32 %v1747, %v1832
        %v1858 = vmul.f32 %v1749, %v1833
        %v1859 = vmul.f32 %v1751, %v1833
        %v1860 = vmul.f32 %v1753, %v1834
        %v1861 = vmul.f32 %v1755, %v1834
        %v1862 = vmul.f32 %v1757, %v1835
        %v1863 = vmul.f32 %v1759, %v1835
        %v1864 = vmul.f32 %v1761, %v1836
        %v1865 = vmul.f32 %v1763, %v1836
        %v1866 = vmul.f32 %v1765, %v1837
        %v1867 = vmul.f32 %v1767, %v1837
        %v1868 = vmul.f32 %v1769, %v1838
        %v1869 = vmul.f32 %v1771, %v1838
        %v1870 = vmul.f32 %v1773, %v1839
        %v1871 = vmul.f32 %v1775, %v1839
        %v1872 = vpack.c.bf16 %v1270, %v1266
        %v1873 = vpack.c.bf16 %v1272, %v1268
        %v1874 = vpack.c.bf16 %v1280, %v1276
        %v1875 = vpack.c.bf16 %v1282, %v1278
        %v1876 = vpack.c.bf16 %v1290, %v1286
        %v1877 = vpack.c.bf16 %v1292, %v1288
        %v1878 = vpack.c.bf16 %v1300, %v1296
        %v1879 = vpack.c.bf16 %v1302, %v1298
        %v1880 = vpack.c.bf16 %v1310, %v1306
        %v1881 = vpack.c.bf16 %v1312, %v1308
        %v1882 = vpack.c.bf16 %v1320, %v1316
        %v1883 = vpack.c.bf16 %v1322, %v1318
        %v1884 = vpack.c.bf16 %v1330, %v1326
        %v1885 = vpack.c.bf16 %v1332, %v1328
        %v1886 = vpack.c.bf16 %v1340, %v1336
        %v1887 = vpack.c.bf16 %v1342, %v1338
        %v1888 = vpack.c.bf16 %v1842, %v1840
        %v1889 = vpack.c.bf16 %v1843, %v1841
        %v1890 = vpack.c.bf16 %v1846, %v1844
        %v1891 = vpack.c.bf16 %v1847, %v1845
        %v1892 = vpack.c.bf16 %v1850, %v1848
        %v1893 = vpack.c.bf16 %v1851, %v1849
        %v1894 = vpack.c.bf16 %v1854, %v1852
        %v1895 = vpack.c.bf16 %v1855, %v1853
        %v1896 = vpack.c.bf16 %v1858, %v1856
        %v1897 = vpack.c.bf16 %v1859, %v1857
        %v1898 = vpack.c.bf16 %v1862, %v1860
        %v1899 = vpack.c.bf16 %v1863, %v1861
        %v1900 = vpack.c.bf16 %v1866, %v1864
        %v1901 = vpack.c.bf16 %v1867, %v1865
        %v1902 = vpack.c.bf16 %v1870, %v1868
        %v1903 = vpack.c.bf16 %v1871, %v1869
        %1904 = vmatprep.subr.bf16.mxu0 %v1903
        %1905 = vmatpush1.bf16.xpose.msra.mxu0 %v1902
        %1906 = vmatprep.subr.bf16.mxu0 %v1901
        %1907 = vmatpush1.bf16.xpose.msra.mxu0 %v1900
        %1908 = vmatprep.subr.bf16.mxu0 %v1899
        %1909 = vmatpush1.bf16.xpose.msra.mxu0 %v1898
        %1910 = vmatprep.subr.bf16.mxu0 %v1897
        %1911 = vmatpush1.bf16.xpose.msra.mxu0 %v1896
        %1912 = vmatprep.subr.bf16.mxu0 %v1895
        %1913 = vmatpush1.bf16.xpose.msra.mxu0 %v1894
        %1914 = vmatprep.subr.bf16.mxu0 %v1893
        %1915 = vmatpush1.bf16.xpose.msra.mxu0 %v1892
        %1916 = vmatprep.subr.bf16.mxu0 %v1891
        %1917 = vmatpush1.bf16.xpose.msra.mxu0 %v1890
        %1918 = vmatprep.subr.bf16.mxu0 %v1889
        %1919 = vmatpush1.bf16.xpose.msra.mxu0 %v1888
        %1920 = vmatprep.subr.bf16.mxu0 0
        %1921 = vmatpush2.bf16.xpose.msra.mxu0 0
        %1922 = vmatprep.subr.bf16.mxu0 0
        %1923 = vmatpush2.bf16.xpose.msra.mxu0 0
        %1924 = vmatprep.subr.bf16.mxu0 0
        %1925 = vmatpush2.bf16.xpose.msra.mxu0 0
        %1926 = vmatprep.subr.bf16.mxu0 0
        %1927 = vmatpush2.bf16.xpose.msra.mxu0 0
        %1928 = vmatprep.subr.bf16.mxu0 0
        %1929 = vmatpush2.bf16.xpose.msra.mxu0 0
        %1930 = vmatprep.subr.bf16.mxu0 0
        %1931 = vmatpush2.bf16.xpose.msra.mxu0 0
        %1932 = vmatprep.subr.bf16.mxu0 0
        %1933 = vmatpush2.bf16.xpose.msra.mxu0 0
        %1934 = vmatprep.subr.bf16.mxu0 0
        %1935 = vmatpush2.bf16.xpose.msra.mxu0 0
        %1936 = vmatprep.mubr.bf16.mxu0 %v1873
        %1937 = vmatmul.mubr.bf16.gmra.mxu0 %v1872
        %v1938 = vpop.f32.mrf.mxu0
        %v1939 = vadd.f32 0.0, %v1938
        %v1940 = vpop.f32.mrf.mxu0
        %v1941 = vpop.f32.mrf.mxu0
        %v1942 = vadd.f32 0.0, %v1941
        %v1943 = vpop.f32.mrf.mxu0
        %1944 = vmatprep.mubr.bf16.mxu0 %v1875
        %1945 = vmatmul.mubr.bf16.gmra.mxu0 %v1874
        %v1946 = vpop.f32.mrf.mxu0
        %v1947 = vadd.f32 0.0, %v1946
        %v1948 = vpop.f32.mrf.mxu0
        %v1949 = vpop.f32.mrf.mxu0
        %v1950 = vadd.f32 0.0, %v1949
        %v1951 = vpop.f32.mrf.mxu0
        %1952 = vmatprep.mubr.bf16.mxu0 %v1877
        %1953 = vmatmul.mubr.bf16.gmra.mxu0 %v1876
        %v1954 = vpop.f32.mrf.mxu0
        %v1955 = vadd.f32 0.0, %v1954
        %v1956 = vpop.f32.mrf.mxu0
        %v1957 = vpop.f32.mrf.mxu0
        %v1958 = vadd.f32 0.0, %v1957
        %v1959 = vpop.f32.mrf.mxu0
        %1960 = vmatprep.mubr.bf16.mxu0 %v1879
        %1961 = vmatmul.mubr.bf16.gmra.mxu0 %v1878
        %v1962 = vpop.f32.mrf.mxu0
        %v1963 = vadd.f32 0.0, %v1962
        %v1964 = vpop.f32.mrf.mxu0
        %v1965 = vpop.f32.mrf.mxu0
        %v1966 = vadd.f32 0.0, %v1965
        %v1967 = vpop.f32.mrf.mxu0
        %1968 = vmatprep.mubr.bf16.mxu0 %v1881
        %1969 = vmatmul.mubr.bf16.gmra.mxu0 %v1880
        %v1970 = vpop.f32.mrf.mxu0
        %v1971 = vadd.f32 0.0, %v1970
        %v1972 = vpop.f32.mrf.mxu0
        %v1973 = vpop.f32.mrf.mxu0
        %v1974 = vadd.f32 0.0, %v1973
        %v1975 = vpop.f32.mrf.mxu0
        %1976 = vmatprep.mubr.bf16.mxu0 %v1883
        %1977 = vmatmul.mubr.bf16.gmra.mxu0 %v1882
        %v1978 = vpop.f32.mrf.mxu0
        %v1979 = vadd.f32 0.0, %v1978
        %v1980 = vpop.f32.mrf.mxu0
        %v1981 = vpop.f32.mrf.mxu0
        %v1982 = vadd.f32 0.0, %v1981
        %v1983 = vpop.f32.mrf.mxu0
        %1984 = vmatprep.mubr.bf16.mxu0 %v1885
        %1985 = vmatmul.mubr.bf16.gmra.mxu0 %v1884
        %v1986 = vpop.f32.mrf.mxu0
        %v1987 = vadd.f32 0.0, %v1986
        %v1988 = vpop.f32.mrf.mxu0
        %v1989 = vpop.f32.mrf.mxu0
        %v1990 = vadd.f32 0.0, %v1989
        %v1991 = vpop.f32.mrf.mxu0
        %1992 = vmatprep.mubr.bf16.mxu0 %v1887
        %1993 = vmatmul.mubr.bf16.gmra.mxu0 %v1886
        %v1994 = vpop.f32.mrf.mxu0
        %v1995 = vadd.f32 0.0, %v1994
        %v1996 = vpop.f32.mrf.mxu0
        %v1997 = vpop.f32.mrf.mxu0
        %v1998 = vadd.f32 0.0, %v1997
        %v1999 = vpop.f32.mrf.mxu0
        %2000 = vdwg.mxu0
        %v2001 = vmul.f32 %v1939, %v838
        %v2002 = vmul.f32 %v1942, %v839
        %v2003 = vmul.f32 %v1947, %v840
        %v2004 = vmul.f32 %v1950, %v841
        %v2005 = vmul.f32 %v1955, %v842
        %v2006 = vmul.f32 %v1958, %v843
        %v2007 = vmul.f32 %v1963, %v844
        %v2008 = vmul.f32 %v1966, %v845
        %v2009 = vmul.f32 %v1971, %v846
        %v2010 = vmul.f32 %v1974, %v847
        %v2011 = vmul.f32 %v1979, %v848
        %v2012 = vmul.f32 %v1982, %v849
        %v2013 = vmul.f32 %v1987, %v850
        %v2014 = vmul.f32 %v1990, %v851
        %v2015 = vmul.f32 %v1995, %v852
        %v2016 = vmul.f32 %v1998, %v853
        %v2017 = vpack.c.bf16 %v2002, %v2001
        %v2018 = vpack.c.bf16 %v2004, %v2003
        %v2019 = vpack.c.bf16 %v2006, %v2005
        %v2020 = vpack.c.bf16 %v2008, %v2007
        %v2021 = vpack.c.bf16 %v2010, %v2009
        %v2022 = vpack.c.bf16 %v2012, %v2011
        %v2023 = vpack.c.bf16 %v2014, %v2013
        %v2024 = vpack.c.bf16 %v2016, %v2015
        %v2025 = vpack.c.bf16 %v1602, %v1600
        %v2026 = vpack.c.bf16 %v1603, %v1601
        %v2027 = vpack.c.bf16 %v1606, %v1604
        %v2028 = vpack.c.bf16 %v1607, %v1605
        %v2029 = vpack.c.bf16 %v1610, %v1608
        %v2030 = vpack.c.bf16 %v1611, %v1609
        %v2031 = vpack.c.bf16 %v1614, %v1612
        %v2032 = vpack.c.bf16 %v1615, %v1613
        %v2033 = vpack.c.bf16 %v1618, %v1616
        %v2034 = vpack.c.bf16 %v1619, %v1617
        %v2035 = vpack.c.bf16 %v1622, %v1620
        %v2036 = vpack.c.bf16 %v1623, %v1621
        %v2037 = vpack.c.bf16 %v1626, %v1624
        %v2038 = vpack.c.bf16 %v1627, %v1625
        %v2039 = vpack.c.bf16 %v1630, %v1628
        %v2040 = vpack.c.bf16 %v1631, %v1629
        %2041 = vmatprep.subr.bf16.mxu0 %v2040
        %2042 = vmatpush1.bf16.msra.mxu0 %v2039
        %2043 = vmatprep.subr.bf16.mxu0 %v2038
        %2044 = vmatpush1.bf16.msra.mxu0 %v2037
        %2045 = vmatprep.subr.bf16.mxu0 %v2036
        %2046 = vmatpush1.bf16.msra.mxu0 %v2035
        %2047 = vmatprep.subr.bf16.mxu0 %v2034
        %2048 = vmatpush1.bf16.msra.mxu0 %v2033
        %2049 = vmatprep.subr.bf16.mxu0 %v2032
        %2050 = vmatpush1.bf16.msra.mxu0 %v2031
        %2051 = vmatprep.subr.bf16.mxu0 %v2030
        %2052 = vmatpush1.bf16.msra.mxu0 %v2029
        %2053 = vmatprep.subr.bf16.mxu0 %v2028
        %2054 = vmatpush1.bf16.msra.mxu0 %v2027
        %2055 = vmatprep.subr.bf16.mxu0 %v2026
        %2056 = vmatpush1.bf16.msra.mxu0 %v2025
        %2057 = vmatprep.subr.bf16.mxu0 0
        %2058 = vmatpush2.bf16.msra.mxu0 0
        %2059 = vmatprep.subr.bf16.mxu0 0
        %2060 = vmatpush2.bf16.msra.mxu0 0
        %2061 = vmatprep.subr.bf16.mxu0 0
        %2062 = vmatpush2.bf16.msra.mxu0 0
        %2063 = vmatprep.subr.bf16.mxu0 0
        %2064 = vmatpush2.bf16.msra.mxu0 0
        %2065 = vmatprep.subr.bf16.mxu0 0
        %2066 = vmatpush2.bf16.msra.mxu0 0
        %2067 = vmatprep.subr.bf16.mxu0 0
        %2068 = vmatpush2.bf16.msra.mxu0 0
        %2069 = vmatprep.subr.bf16.mxu0 0
        %2070 = vmatpush2.bf16.msra.mxu0 0
        %2071 = vmatprep.subr.bf16.mxu0 0
        %2072 = vmatpush2.bf16.msra.mxu0 0
        %2073 = vmatprep.mubr.bf16.mxu0 0
        %2074 = vmatmul.mubr.bf16.gmra.mxu0 %v2017
        %v2075 = vpop.f32.mrf.mxu0
        %v2076 = vadd.f32 0.0, %v2075
        %v2077 = vpop.f32.mrf.mxu0
        %v2078 = vadd.f32 0.0, %v2077
        %v2079 = vpop.f32.mrf.mxu0
        %v2080 = vadd.f32 0.0, %v2079
        %v2081 = vpop.f32.mrf.mxu0
        %v2082 = vadd.f32 0.0, %v2081
        %2083 = vmatprep.mubr.bf16.mxu0 0
        %2084 = vmatmul.mubr.bf16.gmra.mxu0 %v2018
        %v2085 = vpop.f32.mrf.mxu0
        %v2086 = vadd.f32 0.0, %v2085
        %v2087 = vpop.f32.mrf.mxu0
        %v2088 = vadd.f32 0.0, %v2087
        %v2089 = vpop.f32.mrf.mxu0
        %v2090 = vadd.f32 0.0, %v2089
        %v2091 = vpop.f32.mrf.mxu0
        %v2092 = vadd.f32 0.0, %v2091
        %2093 = vmatprep.mubr.bf16.mxu0 0
        %2094 = vmatmul.mubr.bf16.gmra.mxu0 %v2019
        %v2095 = vpop.f32.mrf.mxu0
        %v2096 = vadd.f32 0.0, %v2095
        %v2097 = vpop.f32.mrf.mxu0
        %v2098 = vadd.f32 0.0, %v2097
        %v2099 = vpop.f32.mrf.mxu0
        %v2100 = vadd.f32 0.0, %v2099
        %v2101 = vpop.f32.mrf.mxu0
        %v2102 = vadd.f32 0.0, %v2101
        %2103 = vmatprep.mubr.bf16.mxu0 0
        %2104 = vmatmul.mubr.bf16.gmra.mxu0 %v2020
        %v2105 = vpop.f32.mrf.mxu0
        %v2106 = vadd.f32 0.0, %v2105
        %v2107 = vpop.f32.mrf.mxu0
        %v2108 = vadd.f32 0.0, %v2107
        %v2109 = vpop.f32.mrf.mxu0
        %v2110 = vadd.f32 0.0, %v2109
        %v2111 = vpop.f32.mrf.mxu0
        %v2112 = vadd.f32 0.0, %v2111
        %2113 = vmatprep.mubr.bf16.mxu0 0
        %2114 = vmatmul.mubr.bf16.gmra.mxu0 %v2021
        %v2115 = vpop.f32.mrf.mxu0
        %v2116 = vadd.f32 0.0, %v2115
        %v2117 = vpop.f32.mrf.mxu0
        %v2118 = vadd.f32 0.0, %v2117
        %v2119 = vpop.f32.mrf.mxu0
        %v2120 = vadd.f32 0.0, %v2119
        %v2121 = vpop.f32.mrf.mxu0
        %v2122 = vadd.f32 0.0, %v2121
        %2123 = vmatprep.mubr.bf16.mxu0 0
        %2124 = vmatmul.mubr.bf16.gmra.mxu0 %v2022
        %v2125 = vpop.f32.mrf.mxu0
        %v2126 = vadd.f32 0.0, %v2125
        %v2127 = vpop.f32.mrf.mxu0
        %v2128 = vadd.f32 0.0, %v2127
        %v2129 = vpop.f32.mrf.mxu0
        %v2130 = vadd.f32 0.0, %v2129
        %v2131 = vpop.f32.mrf.mxu0
        %v2132 = vadd.f32 0.0, %v2131
        %2133 = vmatprep.mubr.bf16.mxu0 0
        %2134 = vmatmul.mubr.bf16.gmra.mxu0 %v2023
        %v2135 = vpop.f32.mrf.mxu0
        %v2136 = vadd.f32 0.0, %v2135
        %v2137 = vpop.f32.mrf.mxu0
        %v2138 = vadd.f32 0.0, %v2137
        %v2139 = vpop.f32.mrf.mxu0
        %v2140 = vadd.f32 0.0, %v2139
        %v2141 = vpop.f32.mrf.mxu0
        %v2142 = vadd.f32 0.0, %v2141
        %2143 = vmatprep.mubr.bf16.mxu0 0
        %2144 = vmatmul.mubr.bf16.gmra.mxu0 %v2024
        %v2145 = vpop.f32.mrf.mxu0
        %v2146 = vadd.f32 0.0, %v2145
        %v2147 = vpop.f32.mrf.mxu0
        %v2148 = vadd.f32 0.0, %v2147
        %v2149 = vpop.f32.mrf.mxu0
        %v2150 = vadd.f32 0.0, %v2149
        %v2151 = vpop.f32.mrf.mxu0
        %v2152 = vadd.f32 0.0, %v2151
        %2153 = vdwg.mxu0
        %v2154 = vpack.c.bf16 %v2080, %v2076
        %v2155 = vpack.c.bf16 %v2082, %v2078
        %v2156 = vpack.c.bf16 %v2090, %v2086
        %v2157 = vpack.c.bf16 %v2092, %v2088
        %v2158 = vpack.c.bf16 %v2100, %v2096
        %v2159 = vpack.c.bf16 %v2102, %v2098
        %v2160 = vpack.c.bf16 %v2110, %v2106
        %v2161 = vpack.c.bf16 %v2112, %v2108
        %v2162 = vpack.c.bf16 %v2120, %v2116
        %v2163 = vpack.c.bf16 %v2122, %v2118
        %v2164 = vpack.c.bf16 %v2130, %v2126
        %v2165 = vpack.c.bf16 %v2132, %v2128
        %v2166 = vpack.c.bf16 %v2140, %v2136
        %v2167 = vpack.c.bf16 %v2142, %v2138
        %v2168 = vpack.c.bf16 %v2150, %v2146
        %v2169 = vpack.c.bf16 %v2152, %v2148
        %2171 = vset.pattern.permute.xlu0 0
        %2172 = vperm.xlu0 %2171, %v303
        %v2173 = vpop.permute.xlu0 %2172
        %2176 = vset.pattern.permute.xlu0 0
        %2177 = vperm.xlu0 %2176, %v304
        %v2178 = vpop.permute.xlu0 %2177
        %2181 = vset.pattern.permute.xlu0 0
        %2182 = vperm.xlu0 %2181, %v305
        %v2183 = vpop.permute.xlu0 %2182
        %2186 = vset.pattern.permute.xlu0 0
        %2187 = vperm.xlu0 %2186, %v306
        %v2188 = vpop.permute.xlu0 %2187
        %v2194 = vunpack.c.l.b16 %v299
        %v2195 = vunpack.c.l.b16 %v300
        %v2196 = vunpack.c.l.b16 %v301
        %v2197 = vunpack.c.l.b16 %v302
        %v2198 = vpack.c.b16 %v2195, %v2194
        %v2199 = vpack.c.b16 %v2197, %v2196
        %2202 = vmatprep.subr.bf16.mxu0 %v2169
        %2203 = vmatpush1.bf16.msra.mxu0 %v2168
        %2204 = vmatprep.subr.bf16.mxu0 %v2167
        %2205 = vmatpush1.bf16.msra.mxu0 %v2166
        %2206 = vmatprep.subr.bf16.mxu0 %v2165
        %2207 = vmatpush1.bf16.msra.mxu0 %v2164
        %2208 = vmatprep.subr.bf16.mxu0 %v2163
        %2209 = vmatpush1.bf16.msra.mxu0 %v2162
        %2210 = vmatprep.subr.bf16.mxu0 %v2161
        %2211 = vmatpush1.bf16.msra.mxu0 %v2160
        %2212 = vmatprep.subr.bf16.mxu0 %v2159
        %2213 = vmatpush1.bf16.msra.mxu0 %v2158
        %2214 = vmatprep.subr.bf16.mxu0 %v2157
        %2215 = vmatpush1.bf16.msra.mxu0 %v2156
        %2216 = vmatprep.subr.bf16.mxu0 %v2155
        %2217 = vmatpush1.bf16.msra.mxu0 %v2154
        %2218 = vmatprep.subr.bf16.mxu0 0
        %2219 = vmatpush2.bf16.msra.mxu0 0
        %2220 = vmatprep.subr.bf16.mxu0 0
        %2221 = vmatpush2.bf16.msra.mxu0 0
        %2222 = vmatprep.subr.bf16.mxu0 0
        %2223 = vmatpush2.bf16.msra.mxu0 0
        %2224 = vmatprep.subr.bf16.mxu0 0
        %2225 = vmatpush2.bf16.msra.mxu0 0
        %2226 = vmatprep.subr.bf16.mxu0 0
        %2227 = vmatpush2.bf16.msra.mxu0 0
        %2228 = vmatprep.subr.bf16.mxu0 0
        %2229 = vmatpush2.bf16.msra.mxu0 0
        %2230 = vmatprep.subr.bf16.mxu0 0
        %2231 = vmatpush2.bf16.msra.mxu0 0
        %2232 = vmatprep.subr.bf16.mxu0 0
        %2233 = vmatpush2.bf16.msra.mxu0 0
        %2234 = vmatprep.mubr.bf16.mxu0 0
        %2235 = vmatmul.mubr.bf16.gmra.mxu0 %v2198
        %v2236 = vpop.f32.mrf.mxu0
        %v2237 = vadd.f32 %v2173, %v2236
        %v2238 = vpop.f32.mrf.mxu0
        %v2239 = vadd.f32 %v2173, %v2238
        %v2240 = vpop.f32.mrf.mxu0
        %v2241 = vadd.f32 %v2178, %v2240
        %v2242 = vpop.f32.mrf.mxu0
        %v2243 = vadd.f32 %v2178, %v2242
        %2244 = vmatprep.mubr.bf16.mxu0 0
        %2245 = vmatmul.mubr.bf16.gmra.mxu0 %v2199
        %v2246 = vpop.f32.mrf.mxu0
        %v2247 = vadd.f32 %v2183, %v2246
        %v2248 = vpop.f32.mrf.mxu0
        %v2249 = vadd.f32 %v2183, %v2248
        %v2250 = vpop.f32.mrf.mxu0
        %v2251 = vadd.f32 %v2188, %v2250
        %v2252 = vpop.f32.mrf.mxu0
        %v2253 = vadd.f32 %v2188, %v2252
        %2254 = vdwg.mxu0
        %v2255 = vadd.f32 %v2237, %v2239
        %2256 = vadd.xlane.f32.xlu0 %v2255
        %v2257 = vpop.xlane.xlu0 %2256
        %v2258 = vadd.f32 %v2241, %v2243
        %2259 = vadd.xlane.f32.xlu0 %v2258
        %v2260 = vpop.xlane.xlu0 %2259
        %v2261 = vadd.f32 %v2247, %v2249
        %2262 = vadd.xlane.f32.xlu0 %v2261
        %v2263 = vpop.xlane.xlu0 %2262
        %v2264 = vadd.f32 %v2251, %v2253
        %2265 = vadd.xlane.f32.xlu0 %v2264
        %v2266 = vpop.xlane.xlu0 %2265
        %v2267 = vmul.f32 %v2237, %v2237
        %v2268 = vmul.f32 %v2239, %v2239
        %v2269 = vmul.f32 %v2241, %v2241
        %v2270 = vmul.f32 %v2243, %v2243
        %v2271 = vmul.f32 %v2247, %v2247
        %v2272 = vmul.f32 %v2249, %v2249
        %v2273 = vmul.f32 %v2251, %v2251
        %v2274 = vmul.f32 %v2253, %v2253
        %v2275 = vadd.f32 %v2267, %v2268
        %2276 = vadd.xlane.f32.xlu0 %v2275
        %v2277 = vpop.xlane.xlu0 %2276
        %v2278 = vadd.f32 %v2269, %v2270
        %2279 = vadd.xlane.f32.xlu0 %v2278
        %v2280 = vpop.xlane.xlu0 %2279
        %v2281 = vadd.f32 %v2271, %v2272
        %2282 = vadd.xlane.f32.xlu0 %v2281
        %v2283 = vpop.xlane.xlu0 %2282
        %v2284 = vadd.f32 %v2273, %v2274
        %2285 = vadd.xlane.f32.xlu0 %v2284
        %v2286 = vpop.xlane.xlu0 %2285
        %vm2287 = vcmask 7168
        %v2288 = vsel %vm2287, %v2257, 0.0
        %v2289 = vsel %vm2287, %v2260, 0.0
        %v2290 = vadd.f32 %v2288, %v2289
        %v2291 = vsel %vm2287, %v2263, 0.0
        %v2292 = vadd.f32 %v2290, %v2291
        %v2293 = vsel %vm2287, %v2266, 0.0
        %v2294 = vadd.f32 %v2292, %v2293
        %2295 = vadd.xlane.f32.xlu0 %v2294
        %v2296 = vpop.xlane.xlu0 %2295
        %v2297 = vrot.slane %v2296, 4
        %v2298 = vadd.f32 %v2296, %v2297
        %v2299 = vrot.slane %v2298, 2
        %v2300 = vadd.f32 %v2298, %v2299
        %v2301 = vrot.slane %v2300, 1
        %v2302 = vadd.f32 %v2300, %v2301
        %s2303 = vtos %v2302
        %s2304 = smul.f32 %s2303, 0.00012207031
        %v2305 = vsel %vm2287, %v2277, 0.0
        %v2306 = vsel %vm2287, %v2280, 0.0
        %v2307 = vadd.f32 %v2305, %v2306
        %v2308 = vsel %vm2287, %v2283, 0.0
        %v2309 = vadd.f32 %v2307, %v2308
        %v2310 = vsel %vm2287, %v2286, 0.0
        %v2311 = vadd.f32 %v2309, %v2310
        %2312 = vadd.xlane.f32.xlu0 %v2311
        %v2313 = vpop.xlane.xlu0 %2312
        %v2314 = vrot.slane %v2313, 4
        %v2315 = vadd.f32 %v2313, %v2314
        %v2316 = vrot.slane %v2315, 2
        %v2317 = vadd.f32 %v2315, %v2316
        %v2318 = vrot.slane %v2317, 1
        %v2319 = vadd.f32 %v2317, %v2318
        %s2320 = vtos %v2319
        %s2321 = smul.f32 %s2320, 0.00012207031
        %s2322 = smul.f32 %s2304, %s2304
        %s2323 = ssub.f32 %s2321, %s2322
        %s2324 = sadd.f32 %s2323, 1e-05
        %v2325 = vstv %s2324
        %v2326 = vrsqrt.pop %v2325
        %s2327 = vtos %v2326
        %v2328 = vstv %s2327
        %v2329 = vmul.f32 %v2328, %v307
        %v2330 = vmul.f32 %v2328, %v308
        %v2331 = vmul.f32 %v2328, %v309
        %v2332 = vmul.f32 %v2328, %v310
        %v2333 = vstv %s2304
        %v2334 = vmul.f32 %v2333, %v2329
        %v2335 = vmul.f32 %v2333, %v2330
        %v2336 = vmul.f32 %v2333, %v2331
        %v2337 = vmul.f32 %v2333, %v2332
        %v2338 = vsub.f32 %v311, %v2334
        %v2339 = vsub.f32 %v312, %v2335
        %v2340 = vsub.f32 %v313, %v2336
        %v2341 = vsub.f32 %v314, %v2337
        %2343 = vset.pattern.permute.xlu0 0
        %2344 = vperm.xlu0 %2343, %v2329
        %v2345 = vpop.permute.xlu0 %2344
        %2348 = vset.pattern.permute.xlu0 0
        %2349 = vperm.xlu0 %2348, %v2330
        %v2350 = vpop.permute.xlu0 %2349
        %2353 = vset.pattern.permute.xlu0 0
        %2354 = vperm.xlu0 %2353, %v2331
        %v2355 = vpop.permute.xlu0 %2354
        %2358 = vset.pattern.permute.xlu0 0
        %2359 = vperm.xlu0 %2358, %v2332
        %v2360 = vpop.permute.xlu0 %2359
        %v2362 = vmul.f32 %v2237, %v2345
        %v2363 = vmul.f32 %v2239, %v2345
        %v2364 = vmul.f32 %v2241, %v2350
        %v2365 = vmul.f32 %v2243, %v2350
        %v2366 = vmul.f32 %v2247, %v2355
        %v2367 = vmul.f32 %v2249, %v2355
        %v2368 = vmul.f32 %v2251, %v2360
        %v2369 = vmul.f32 %v2253, %v2360
        %2371 = vset.pattern.permute.xlu0 0
        %2372 = vperm.xlu0 %2371, %v2338
        %v2373 = vpop.permute.xlu0 %2372
        %2376 = vset.pattern.permute.xlu0 0
        %2377 = vperm.xlu0 %2376, %v2339
        %v2378 = vpop.permute.xlu0 %2377
        %2381 = vset.pattern.permute.xlu0 0
        %2382 = vperm.xlu0 %2381, %v2340
        %v2383 = vpop.permute.xlu0 %2382
        %2386 = vset.pattern.permute.xlu0 0
        %2387 = vperm.xlu0 %2386, %v2341
        %v2388 = vpop.permute.xlu0 %2387
        %v2390 = vadd.f32 %v2362, %v2373
        %v2391 = vadd.f32 %v2363, %v2373
        %v2392 = vadd.f32 %v2364, %v2378
        %v2393 = vadd.f32 %v2365, %v2378
        %v2394 = vadd.f32 %v2366, %v2383
        %v2395 = vadd.f32 %v2367, %v2383
        %v2396 = vadd.f32 %v2368, %v2388
        %v2397 = vadd.f32 %v2369, %v2388
        %2398 = vst [vmem:[%s244] sm:$0xff] %v2390
        %2399 = vst [vmem:[%s244 + $0x8] sm:$0xff] %v2391
        %2400 = vst [vmem:[%s244 + $0x10] sm:$0xff] %v2392
        %2401 = vst [vmem:[%s244 + $0x18] sm:$0xff] %v2393
        %2402 = vst [vmem:[%s244 + $0x20] sm:$0xff] %v2394
        %2403 = vst [vmem:[%s244 + $0x28] sm:$0xff] %v2395
        %2404 = vst [vmem:[%s244 + $0x30] sm:$0xff] %v2396
        %2405 = vst [vmem:[%s244 + $0x38] sm:$0xff] %v2397
        %s2406 = sand.u32 %s159, 1
        %s2407 = scalar_lea.sflag [#allocation3], %s2406
        %s2408 = sand.u32 %s159, 1
        %s2409 = smul.addr %s2408, 64
        %s2410 = scalar_lea.vmem [#allocation2], %s2409
        // Predicated region
        $region45: #{tpu_custom_call.1} parent=43 // pred_check
          %p2411 = pneg %p169
        $region46: #{tpu_custom_call.1} parent=43 // pred_check_branch
          %2413 = sbr.rel (%p2411) target = $region48
        $region47: #{tpu_custom_call.1} parent=43 // pred_region
          %s2415 = ssub.s32 1024, 1024
          %2416 = vsyncadd %s2407, %s2415
          %s2417 = smul.addr %s20, 8
          %s2418 = smul.addr %s2417, 128
          %s2419 = scalar_lea.hbm %s6, %s2418
          %s2420 = sshll.u32 %s2410, 4
          %s2421 = int_to_ptr.vmem [resolvable:$true] %s2420
          %2426 = dma.vmem_to_hbm [thread:$0]  %s2421, 1024, %s2419, %s2407, 256, 256, 16
        $region48: #{tpu_custom_call.1} parent=43 // pred_fallthru
          _
      $region44: #{tpu_custom_call.1} parent=5 // pred_fallthru
        _
      %p2427 = scmp.le.s32.totalorder 2, %s15
      // Predicated region
      $region49: #{tpu_custom_call.1} parent=5 // pred_check
        %p2428 = pneg %p2427
      $region50: #{tpu_custom_call.1} parent=5 // pred_check_branch
        %2430 = sbr.rel (%p2428) target = $region52
      $region51: #{tpu_custom_call.1} parent=5 // pred_region
        %s2431 = ssub.s32 %s15, 2
        // Predicated region
        $region53: #{tpu_custom_call.1} parent=51 // pred_check
          %p2432 = pneg %p175
        $region54: #{tpu_custom_call.1} parent=51 // pred_check_branch
          %2434 = sbr.rel (%p2432) target = $region56
        $region55: #{tpu_custom_call.1} parent=51 // pred_region
          %s2435 = sand.u32 %s160, 1
          %s2436 = scalar_lea.sflag [#allocation3], %s2435
          %s2437 = sand.u32 %s160, 1
          %s2438 = smul.addr %s2437, 64
          %s2439 = scalar_lea.vmem [#allocation2], %s2438
          %2440 = dma.done %s2436, 1024
        $region56: #{tpu_custom_call.1} parent=51 // pred_fallthru
          _
      $region52: #{tpu_custom_call.1} parent=5 // pred_fallthru
        _
    $region6: #{tpu_custom_call.1} parent=1 // loop_footer
      %s19 = sadd.s32 1, %s15
    $region7: #{tpu_custom_call.1} parent=1 // loop_footer_branch
      %14 = sbr.rel target = $region3
    $region8: #{tpu_custom_call.1} parent=1 // loop_exit
      _
    %2441 = vsyncpa [#allocation3], 1
    %s2442 = scalar_lea.sflag [#allocation3], 1
    %2443 = vsyncpa %s2442, 1

</llo_original>
